<compile_context>
chip_gen: v7x
topology: tpu7x:2x2x1
jax: 0.10.0
libtpu: 0.0.40
codegen_flags: <defaults>
</compile_context>

<pallas_src>
import numpy as np

import jax
import jax.numpy as jnp
from jax.experimental import pallas as pl
from jax.experimental.pallas import tpu as pltpu


# ---------------- fused kernel ----------------

def _make_kernel(H, W, c_in, c_outs):
    """Builds the fused [conv3x3 + folded-BN + ReLU] x len(c_outs) kernel.

    Ref layout per grid step (one batch element):
      x_ref:          (1, H, W*c_in)          bf16, channels packed per pixel
      per layer l:    t0,t1,t2 (W*cin, W*cout) bf16 block-Toeplitz weights
                      s, b     (1, W*cout)     f32 folded BN scale / bias
      o_ref:          (1, H, W*c_last)         f32 lane-dense output slab
      slab (scratch): (H+2, W*c_max)           bf16 activation slab w/ 2 halo rows
    """
    n_layers = len(c_outs)

    def kernel(*refs):
        x_ref = refs[0]
        layer_refs = refs[1:1 + 5 * n_layers]
        o_ref = refs[1 + 5 * n_layers]
        slab = refs[2 + 5 * n_layers]

        # Zero only the two vertical-halo rows (horizontal zero-padding is
        # folded into the block-Toeplitz weights).  Cheap (2 rows) and safe
        # under megacore sharding of the batch axis.
        zero_row = jnp.zeros((1, slab.shape[1]), slab.dtype)
        slab[0:1, :] = zero_row
        slab[H + 1:H + 2, :] = zero_row

        # Layer-1 input into the interior rows (lane-dense full-width store;
        # border rows stay zero, stale lanes beyond W*cin are never read).
        slab[1:H + 1, :W * c_in] = x_ref[0]

        cin = c_in
        for l in range(n_layers):
            cout = c_outs[l]
            t0, t1, t2, s_ref, b_ref = layer_refs[5 * l:5 * l + 5]
            # Three lane-dense MXU pushes, one per kh row tap; output row h
            # reads slab rows h+kh (slab row r holds image row r-1).
            acc = jnp.dot(slab[0:H, :W * cin], t0[...],
                          preferred_element_type=jnp.float32)
            acc += jnp.dot(slab[1:H + 1, :W * cin], t1[...],
                           preferred_element_type=jnp.float32)
            acc += jnp.dot(slab[2:H + 2, :W * cin], t2[...],
                           preferred_element_type=jnp.float32)
            # Folded-BN affine + ReLU in f32 on the VPU.
            y = jnp.maximum(acc * s_ref[...] + b_ref[...], 0.0)
            if l + 1 < n_layers:
                # Next layer's input: bf16, interior rows, stays in VMEM.
                slab[1:H + 1, :W * cout] = y.astype(slab.dtype)
            else:
                o_ref[...] = y.reshape(1, H, W * cout)
            cin = cout

    return kernel


def nested_block_fused(x_slab, packed_layers, c_in):
    """x_slab: (N, H, W*c_in) bf16 lane-dense input.  Returns (N, H, W*Cout) f32."""
    N, H, WC = x_slab.shape
    W = WC // c_in
    c_outs = [l["scale"].shape[1] // W for l in packed_layers]
    c_last = c_outs[-1]
    c_max = max([c_in] + c_outs)

    in_specs = [pl.BlockSpec((1, H, W * c_in), lambda n: (n, 0, 0))]
    args = [x_slab]
    cin = c_in
    for l, cout in zip(packed_layers, c_outs):
        # Constant index maps -> weights/scale/bias DMA'd once, stay resident.
        for t in l["t"]:
            in_specs.append(pl.BlockSpec((W * cin, W * cout), lambda n: (0, 0)))
            args.append(t)
        in_specs.append(pl.BlockSpec((1, W * cout), lambda n: (0, 0)))
        args.append(l["scale"])
        in_specs.append(pl.BlockSpec((1, W * cout), lambda n: (0, 0)))
        args.append(l["bias"])
        cin = cout

    return pl.pallas_call(
        _make_kernel(H, W, c_in, c_outs),
        out_shape=jax.ShapeDtypeStruct((N, H, W * c_last), jnp.float32),
        grid=(N,),
        in_specs=in_specs,
        out_specs=pl.BlockSpec((1, H, W * c_last), lambda n: (n, 0, 0)),
        scratch_shapes=[pltpu.VMEM((H + 2, W * c_max), jnp.bfloat16)],
        compiler_params=pltpu.CompilerParams(
            dimension_semantics=("parallel",)),
    )(*args)


# ---------------- parameter construction (deterministic) ----------------

def init_conv_params(key, cin, cout):
    """Conv2d(cin, cout, 3, padding=1)-style init + eval-mode BN params."""
    kw_, kb_ = jax.random.split(key)
    fan_in = float(cin * 9)
    bound = fan_in ** -0.5
    w = jax.random.uniform(kw_, (3, 3, cin, cout), jnp.float32, -bound, bound)
    b = jax.random.uniform(kb_, (cout,), jnp.float32, -bound, bound)
    gamma = jnp.ones((cout,), jnp.float32)
    beta = jnp.zeros((cout,), jnp.float32)
    running_mean = jnp.zeros((cout,), jnp.float32)
    running_var = jnp.ones((cout,), jnp.float32)
    eps = 1e-5
    # Fold conv bias + eval-mode BN into a post-matmul scale/bias.
    scale = gamma / jnp.sqrt(running_var + eps)
    bias_eff = (b - running_mean) * scale + beta
    return {"w": w, "scale": scale, "bias": bias_eff}


def init_double_conv(key, cin, cout):
    k1, k2 = jax.random.split(key)
    return [init_conv_params(k1, cin, cout), init_conv_params(k2, cout, cout)]


def init_nested_conv_block(key, in_channels, mid_channels, out_channels):
    k1, k2 = jax.random.split(key)
    return {
        "conv1": init_double_conv(k1, in_channels, mid_channels),
        "conv2": init_double_conv(k2, mid_channels, out_channels),
    }


# ---------------- weight packing (block-Toeplitz, done once, outside jit) ----

def _block_toeplitz(w_kh, W):
    """(3, Cin, Cout) taps for one kh -> (W*Cin, W*Cout) bf16 matrix.

    T[wi*Cin + ci, wo*Cout + co] = w[kw=wi-wo+1, ci, co] for wi in [0, W);
    out-of-range horizontal taps are simply absent == zero padding.
    """
    w_kh = np.asarray(w_kh, dtype=np.float32)
    _, cin, cout = w_kh.shape
    t = np.zeros((W * cin, W * cout), np.float32)
    for wo in range(W):
        for kw in range(3):
            wi = wo + kw - 1
            if 0 <= wi < W:
                t[wi * cin:(wi + 1) * cin, wo * cout:(wo + 1) * cout] = w_kh[kw]
    return jnp.asarray(t, dtype=jnp.bfloat16)


def _pack_layer(p, W):
    cout = p["w"].shape[3]
    return {
        "t": [_block_toeplitz(p["w"][kh], W) for kh in range(3)],
        # Per-channel affine tiled to the lane layout (lane = wo*cout + co).
        "scale": jnp.tile(p["scale"], W).reshape(1, W * cout).astype(jnp.float32),
        "bias": jnp.tile(p["bias"], W).reshape(1, W * cout).astype(jnp.float32),
    }


def pack_nested_conv_block(params, W):
    return [_pack_layer(p, W) for p in (params["conv1"] + params["conv2"])]


# ---------------- forward ----------------

def nested_conv_block_forward(packed_layers, x1_nchw, x2_nchw):
    """Matches NestedConvBlock.forward. Inputs/outputs NCHW like PyTorch."""
    N, c1, H, W = x1_nchw.shape
    c2 = x2_nchw.shape[1]
    c_in = c1 + c2
    # NCHW -> NHWC; torch.cat(dim=1) == channel concat in NHWC.
    x1 = jnp.transpose(x1_nchw, (0, 2, 3, 1))
    x2 = jnp.transpose(x2_nchw, (0, 2, 3, 1))
    x = jnp.concatenate([x1, x2], axis=-1)
    # Lane-dense slab (channels packed per pixel); bf16 halves input HBM bytes.
    x = x.reshape(N, H, W * c_in).astype(jnp.bfloat16)

    y = nested_block_fused(x, packed_layers, c_in)          # (N, H, W*Cout) f32
    c_last = y.shape[2] // W
    y = y.reshape(N, H, W, c_last)
    return jnp.transpose(y, (0, 3, 1, 2))                   # NHWC -> NCHW


# ---------------- f32 XLA reference (for a tolerance check) ----------------

def _reference_forward(params, x1_nchw, x2_nchw):
    x = jnp.concatenate([jnp.transpose(x1_nchw, (0, 2, 3, 1)),
                         jnp.transpose(x2_nchw, (0, 2, 3, 1))], axis=-1)
    for p in params["conv1"] + params["conv2"]:
        x = jax.lax.conv_general_dilated(
            x, p["w"], window_strides=(1, 1), padding="SAME",
            dimension_numbers=("NHWC", "HWIO", "NHWC"),
            precision=jax.lax.Precision.HIGHEST)
        x = jnp.maximum(x * p["scale"] + p["bias"], 0.0)
    return jnp.transpose(x, (0, 3, 1, 2))


if __name__ == "__main__":
    key = jax.random.PRNGKey(0)
    k_x1, k_x2, k_p = jax.random.split(key, 3)

    N, C, H, W = 2, 4, 16, 16
    in_channels = 2 * C       # concat of x1, x2
    mid_channels = 8
    out_channels = 8

    x1 = jax.random.normal(k_x1, (N, C, H, W), dtype=jnp.float32)
    x2 = jax.random.normal(k_x2, (N, C, H, W), dtype=jnp.float32)

    params = init_nested_conv_block(k_p, in_channels, mid_channels, out_channels)
    packed = pack_nested_conv_block(params, W)

    fwd = jax.jit(nested_conv_block_forward)
    out = jax.block_until_ready(fwd(packed, x1, x2))
    assert out.shape == (N, out_channels, H, W), out.shape

    # Loose tolerance: kernel uses bf16 activations/weights on the MXU.
    ref = _reference_forward(params, x1, x2)
    err = float(jnp.max(jnp.abs(out - ref)))
    scale = float(jnp.max(jnp.abs(ref))) + 1e-6
    assert err <= 0.08 * scale, (err, scale)

    print("KERNEL_OK")
</pallas_src>

<mosaic_0001>
module attributes {stable_mosaic.version = 11 : i64} {
  func.func @kernel(%arg0: i32, %arg1: memref<1x16x128xbf16, #tpu.memory_space<vmem>>, %arg2: memref<128x128xbf16, #tpu.memory_space<vmem>>, %arg3: memref<128x128xbf16, #tpu.memory_space<vmem>>, %arg4: memref<128x128xbf16, #tpu.memory_space<vmem>>, %arg5: memref<1x128xf32, #tpu.memory_space<vmem>>, %arg6: memref<1x128xf32, #tpu.memory_space<vmem>>, %arg7: memref<128x128xbf16, #tpu.memory_space<vmem>>, %arg8: memref<128x128xbf16, #tpu.memory_space<vmem>>, %arg9: memref<128x128xbf16, #tpu.memory_space<vmem>>, %arg10: memref<1x128xf32, #tpu.memory_space<vmem>>, %arg11: memref<1x128xf32, #tpu.memory_space<vmem>>, %arg12: memref<128x128xbf16, #tpu.memory_space<vmem>>, %arg13: memref<128x128xbf16, #tpu.memory_space<vmem>>, %arg14: memref<128x128xbf16, #tpu.memory_space<vmem>>, %arg15: memref<1x128xf32, #tpu.memory_space<vmem>>, %arg16: memref<1x128xf32, #tpu.memory_space<vmem>>, %arg17: memref<128x128xbf16, #tpu.memory_space<vmem>>, %arg18: memref<128x128xbf16, #tpu.memory_space<vmem>>, %arg19: memref<128x128xbf16, #tpu.memory_space<vmem>>, %arg20: memref<1x128xf32, #tpu.memory_space<vmem>>, %arg21: memref<1x128xf32, #tpu.memory_space<vmem>>, %arg22: memref<1x16x128xf32, #tpu.memory_space<vmem>>, %arg23: memref<18x128xbf16, #tpu.memory_space<vmem>>) attributes {dimension_semantics = [#tpu.dimension_semantics<parallel>], iteration_bounds = array<i64: 2>, scalar_prefetch = 0 : i64, scratch_operands = 1 : i64, tpu.core_type = #tpu.core_type<tc>, window_params = [{transform_indices = @transform_0, window_bounds = array<i64: 1, 16, 128>}, {pipeline_mode = #tpu.pipeline_mode<synchronous>, transform_indices = @transform_1, window_bounds = array<i64: 128, 128>}, {pipeline_mode = #tpu.pipeline_mode<synchronous>, transform_indices = @transform_2, window_bounds = array<i64: 128, 128>}, {pipeline_mode = #tpu.pipeline_mode<synchronous>, transform_indices = @transform_3, window_bounds = array<i64: 128, 128>}, {pipeline_mode = #tpu.pipeline_mode<synchronous>, transform_indices = @transform_4, window_bounds = array<i64: 1, 128>}, {pipeline_mode = #tpu.pipeline_mode<synchronous>, transform_indices = @transform_5, window_bounds = array<i64: 1, 128>}, {pipeline_mode = #tpu.pipeline_mode<synchronous>, transform_indices = @transform_6, window_bounds = array<i64: 128, 128>}, {pipeline_mode = #tpu.pipeline_mode<synchronous>, transform_indices = @transform_7, window_bounds = array<i64: 128, 128>}, {pipeline_mode = #tpu.pipeline_mode<synchronous>, transform_indices = @transform_8, window_bounds = array<i64: 128, 128>}, {pipeline_mode = #tpu.pipeline_mode<synchronous>, transform_indices = @transform_9, window_bounds = array<i64: 1, 128>}, {pipeline_mode = #tpu.pipeline_mode<synchronous>, transform_indices = @transform_10, window_bounds = array<i64: 1, 128>}, {pipeline_mode = #tpu.pipeline_mode<synchronous>, transform_indices = @transform_11, window_bounds = array<i64: 128, 128>}, {pipeline_mode = #tpu.pipeline_mode<synchronous>, transform_indices = @transform_12, window_bounds = array<i64: 128, 128>}, {pipeline_mode = #tpu.pipeline_mode<synchronous>, transform_indices = @transform_13, window_bounds = array<i64: 128, 128>}, {pipeline_mode = #tpu.pipeline_mode<synchronous>, transform_indices = @transform_14, window_bounds = array<i64: 1, 128>}, {pipeline_mode = #tpu.pipeline_mode<synchronous>, transform_indices = @transform_15, window_bounds = array<i64: 1, 128>}, {pipeline_mode = #tpu.pipeline_mode<synchronous>, transform_indices = @transform_16, window_bounds = array<i64: 128, 128>}, {pipeline_mode = #tpu.pipeline_mode<synchronous>, transform_indices = @transform_17, window_bounds = array<i64: 128, 128>}, {pipeline_mode = #tpu.pipeline_mode<synchronous>, transform_indices = @transform_18, window_bounds = array<i64: 128, 128>}, {pipeline_mode = #tpu.pipeline_mode<synchronous>, transform_indices = @transform_19, window_bounds = array<i64: 1, 128>}, {pipeline_mode = #tpu.pipeline_mode<synchronous>, transform_indices = @transform_20, window_bounds = array<i64: 1, 128>}, {transform_indices = @transform_21, window_bounds = array<i64: 1, 16, 128>}]} {
    %cst = arith.constant 0.000000e+00 : bf16
    %0 = vector.broadcast %cst : bf16 to vector<1x128xbf16>
    %c0 = arith.constant 0 : index
    %c0_0 = arith.constant 0 : index
    %1 = vector.load %arg23[%c0, %c0_0] : memref<18x128xbf16, #tpu.memory_space<vmem>>, vector<1x128xbf16>
    tpu.vector_store %arg23[%c0, %c0_0], %0 {strides = array<i32>} : memref<18x128xbf16, #tpu.memory_space<vmem>>, vector<1x128xbf16>,
    %c17 = arith.constant 17 : index
    %c0_1 = arith.constant 0 : index
    %2 = vector.load %arg23[%c17, %c0_1] : memref<18x128xbf16, #tpu.memory_space<vmem>>, vector<1x128xbf16>
    tpu.vector_store %arg23[%c17, %c0_1], %0 {strides = array<i32>} : memref<18x128xbf16, #tpu.memory_space<vmem>>, vector<1x128xbf16>,
    %c0_2 = arith.constant 0 : index
    %c0_3 = arith.constant 0 : index
    %c0_4 = arith.constant 0 : index
    %3 = vector.load %arg1[%c0_2, %c0_3, %c0_4] : memref<1x16x128xbf16, #tpu.memory_space<vmem>>, vector<1x16x128xbf16>
    %4 = vector.shape_cast %3 : vector<1x16x128xbf16> to vector<16x128xbf16>
    %c1 = arith.constant 1 : index
    %c0_5 = arith.constant 0 : index
    %5 = vector.load %arg23[%c1, %c0_5] : memref<18x128xbf16, #tpu.memory_space<vmem>>, vector<16x128xbf16>
    tpu.vector_store %arg23[%c1, %c0_5], %4 {strides = array<i32>} : memref<18x128xbf16, #tpu.memory_space<vmem>>, vector<16x128xbf16>,
    %c0_6 = arith.constant 0 : index
    %c0_7 = arith.constant 0 : index
    %6 = vector.load %arg23[%c0_6, %c0_7] : memref<18x128xbf16, #tpu.memory_space<vmem>>, vector<16x128xbf16>
    %c0_8 = arith.constant 0 : index
    %c0_9 = arith.constant 0 : index
    %7 = vector.load %arg2[%c0_8, %c0_9] : memref<128x128xbf16, #tpu.memory_space<vmem>>, vector<128x128xbf16>
    %cst_10 = arith.constant dense<0.000000e+00> : vector<16x128xf32>
    %8 = tpu.matmul %6, %7, %cst_10 {dimension_numbers = #tpu.dot_dimension_numbers<[1], [0], [0], [1], [0, 0, 1, 1], [], []>} : vector<16x128xbf16>, vector<128x128xbf16>, vector<16x128xf32> -> vector<16x128xf32>
    %c1_11 = arith.constant 1 : index
    %c0_12 = arith.constant 0 : index
    %9 = vector.load %arg23[%c1_11, %c0_12] : memref<18x128xbf16, #tpu.memory_space<vmem>>, vector<16x128xbf16>
    %c0_13 = arith.constant 0 : index
    %c0_14 = arith.constant 0 : index
    %10 = vector.load %arg3[%c0_13, %c0_14] : memref<128x128xbf16, #tpu.memory_space<vmem>>, vector<128x128xbf16>
    %cst_15 = arith.constant dense<0.000000e+00> : vector<16x128xf32>
    %11 = tpu.matmul %9, %10, %cst_15 {dimension_numbers = #tpu.dot_dimension_numbers<[1], [0], [0], [1], [0, 0, 1, 1], [], []>} : vector<16x128xbf16>, vector<128x128xbf16>, vector<16x128xf32> -> vector<16x128xf32>
    %12 = arith.addf %8, %11 : vector<16x128xf32>
    %c2 = arith.constant 2 : index
    %c0_16 = arith.constant 0 : index
    %13 = vector.load %arg23[%c2, %c0_16] : memref<18x128xbf16, #tpu.memory_space<vmem>>, vector<16x128xbf16>
    %c0_17 = arith.constant 0 : index
    %c0_18 = arith.constant 0 : index
    %14 = vector.load %arg4[%c0_17, %c0_18] : memref<128x128xbf16, #tpu.memory_space<vmem>>, vector<128x128xbf16>
    %cst_19 = arith.constant dense<0.000000e+00> : vector<16x128xf32>
    %15 = tpu.matmul %13, %14, %cst_19 {dimension_numbers = #tpu.dot_dimension_numbers<[1], [0], [0], [1], [0, 0, 1, 1], [], []>} : vector<16x128xbf16>, vector<128x128xbf16>, vector<16x128xf32> -> vector<16x128xf32>
    %16 = arith.addf %12, %15 : vector<16x128xf32>
    %c0_20 = arith.constant 0 : index
    %c0_21 = arith.constant 0 : index
    %17 = vector.load %arg5[%c0_20, %c0_21] : memref<1x128xf32, #tpu.memory_space<vmem>>, vector<1x128xf32>
    %18 = vector.broadcast %17 : vector<1x128xf32> to vector<16x128xf32>
    %19 = arith.mulf %16, %18 : vector<16x128xf32>
    %c0_22 = arith.constant 0 : index
    %c0_23 = arith.constant 0 : index
    %20 = vector.load %arg6[%c0_22, %c0_23] : memref<1x128xf32, #tpu.memory_space<vmem>>, vector<1x128xf32>
    %21 = vector.broadcast %20 : vector<1x128xf32> to vector<16x128xf32>
    %22 = arith.addf %19, %21 : vector<16x128xf32>
    %cst_24 = arith.constant 0.000000e+00 : f32
    %23 = vector.broadcast %cst_24 : f32 to vector<16x128xf32>
    %24 = arith.maximumf %22, %23 : vector<16x128xf32>
    %25 = arith.truncf %24 : vector<16x128xf32> to vector<16x128xbf16>
    %c1_25 = arith.constant 1 : index
    %c0_26 = arith.constant 0 : index
    %26 = vector.load %arg23[%c1_25, %c0_26] : memref<18x128xbf16, #tpu.memory_space<vmem>>, vector<16x128xbf16>
    tpu.vector_store %arg23[%c1_25, %c0_26], %25 {strides = array<i32>} : memref<18x128xbf16, #tpu.memory_space<vmem>>, vector<16x128xbf16>,
    %c0_27 = arith.constant 0 : index
    %c0_28 = arith.constant 0 : index
    %27 = vector.load %arg23[%c0_27, %c0_28] : memref<18x128xbf16, #tpu.memory_space<vmem>>, vector<16x128xbf16>
    %c0_29 = arith.constant 0 : index
    %c0_30 = arith.constant 0 : index
    %28 = vector.load %arg7[%c0_29, %c0_30] : memref<128x128xbf16, #tpu.memory_space<vmem>>, vector<128x128xbf16>
    %cst_31 = arith.constant dense<0.000000e+00> : vector<16x128xf32>
    %29 = tpu.matmul %27, %28, %cst_31 {dimension_numbers = #tpu.dot_dimension_numbers<[1], [0], [0], [1], [0, 0, 1, 1], [], []>} : vector<16x128xbf16>, vector<128x128xbf16>, vector<16x128xf32> -> vector<16x128xf32>
    %c1_32 = arith.constant 1 : index
    %c0_33 = arith.constant 0 : index
    %30 = vector.load %arg23[%c1_32, %c0_33] : memref<18x128xbf16, #tpu.memory_space<vmem>>, vector<16x128xbf16>
    %c0_34 = arith.constant 0 : index
    %c0_35 = arith.constant 0 : index
    %31 = vector.load %arg8[%c0_34, %c0_35] : memref<128x128xbf16, #tpu.memory_space<vmem>>, vector<128x128xbf16>
    %cst_36 = arith.constant dense<0.000000e+00> : vector<16x128xf32>
    %32 = tpu.matmul %30, %31, %cst_36 {dimension_numbers = #tpu.dot_dimension_numbers<[1], [0], [0], [1], [0, 0, 1, 1], [], []>} : vector<16x128xbf16>, vector<128x128xbf16>, vector<16x128xf32> -> vector<16x128xf32>
    %33 = arith.addf %29, %32 : vector<16x128xf32>
    %c2_37 = arith.constant 2 : index
    %c0_38 = arith.constant 0 : index
    %34 = vector.load %arg23[%c2_37, %c0_38] : memref<18x128xbf16, #tpu.memory_space<vmem>>, vector<16x128xbf16>
    %c0_39 = arith.constant 0 : index
    %c0_40 = arith.constant 0 : index
    %35 = vector.load %arg9[%c0_39, %c0_40] : memref<128x128xbf16, #tpu.memory_space<vmem>>, vector<128x128xbf16>
    %cst_41 = arith.constant dense<0.000000e+00> : vector<16x128xf32>
    %36 = tpu.matmul %34, %35, %cst_41 {dimension_numbers = #tpu.dot_dimension_numbers<[1], [0], [0], [1], [0, 0, 1, 1], [], []>} : vector<16x128xbf16>, vector<128x128xbf16>, vector<16x128xf32> -> vector<16x128xf32>
    %37 = arith.addf %33, %36 : vector<16x128xf32>
    %c0_42 = arith.constant 0 : index
    %c0_43 = arith.constant 0 : index
    %38 = vector.load %arg10[%c0_42, %c0_43] : memref<1x128xf32, #tpu.memory_space<vmem>>, vector<1x128xf32>
    %39 = vector.broadcast %38 : vector<1x128xf32> to vector<16x128xf32>
    %40 = arith.mulf %37, %39 : vector<16x128xf32>
    %c0_44 = arith.constant 0 : index
    %c0_45 = arith.constant 0 : index
    %41 = vector.load %arg11[%c0_44, %c0_45] : memref<1x128xf32, #tpu.memory_space<vmem>>, vector<1x128xf32>
    %42 = vector.broadcast %41 : vector<1x128xf32> to vector<16x128xf32>
    %43 = arith.addf %40, %42 : vector<16x128xf32>
    %cst_46 = arith.constant 0.000000e+00 : f32
    %44 = vector.broadcast %cst_46 : f32 to vector<16x128xf32>
    %45 = arith.maximumf %43, %44 : vector<16x128xf32>
    %46 = arith.truncf %45 : vector<16x128xf32> to vector<16x128xbf16>
    %c1_47 = arith.constant 1 : index
    %c0_48 = arith.constant 0 : index
    %47 = vector.load %arg23[%c1_47, %c0_48] : memref<18x128xbf16, #tpu.memory_space<vmem>>, vector<16x128xbf16>
    tpu.vector_store %arg23[%c1_47, %c0_48], %46 {strides = array<i32>} : memref<18x128xbf16, #tpu.memory_space<vmem>>, vector<16x128xbf16>,
    %c0_49 = arith.constant 0 : index
    %c0_50 = arith.constant 0 : index
    %48 = vector.load %arg23[%c0_49, %c0_50] : memref<18x128xbf16, #tpu.memory_space<vmem>>, vector<16x128xbf16>
    %c0_51 = arith.constant 0 : index
    %c0_52 = arith.constant 0 : index
    %49 = vector.load %arg12[%c0_51, %c0_52] : memref<128x128xbf16, #tpu.memory_space<vmem>>, vector<128x128xbf16>
    %cst_53 = arith.constant dense<0.000000e+00> : vector<16x128xf32>
    %50 = tpu.matmul %48, %49, %cst_53 {dimension_numbers = #tpu.dot_dimension_numbers<[1], [0], [0], [1], [0, 0, 1, 1], [], []>} : vector<16x128xbf16>, vector<128x128xbf16>, vector<16x128xf32> -> vector<16x128xf32>
    %c1_54 = arith.constant 1 : index
    %c0_55 = arith.constant 0 : index
    %51 = vector.load %arg23[%c1_54, %c0_55] : memref<18x128xbf16, #tpu.memory_space<vmem>>, vector<16x128xbf16>
    %c0_56 = arith.constant 0 : index
    %c0_57 = arith.constant 0 : index
    %52 = vector.load %arg13[%c0_56, %c0_57] : memref<128x128xbf16, #tpu.memory_space<vmem>>, vector<128x128xbf16>
    %cst_58 = arith.constant dense<0.000000e+00> : vector<16x128xf32>
    %53 = tpu.matmul %51, %52, %cst_58 {dimension_numbers = #tpu.dot_dimension_numbers<[1], [0], [0], [1], [0, 0, 1, 1], [], []>} : vector<16x128xbf16>, vector<128x128xbf16>, vector<16x128xf32> -> vector<16x128xf32>
    %54 = arith.addf %50, %53 : vector<16x128xf32>
    %c2_59 = arith.constant 2 : index
    %c0_60 = arith.constant 0 : index
    %55 = vector.load %arg23[%c2_59, %c0_60] : memref<18x128xbf16, #tpu.memory_space<vmem>>, vector<16x128xbf16>
    %c0_61 = arith.constant 0 : index
    %c0_62 = arith.constant 0 : index
    %56 = vector.load %arg14[%c0_61, %c0_62] : memref<128x128xbf16, #tpu.memory_space<vmem>>, vector<128x128xbf16>
    %cst_63 = arith.constant dense<0.000000e+00> : vector<16x128xf32>
    %57 = tpu.matmul %55, %56, %cst_63 {dimension_numbers = #tpu.dot_dimension_numbers<[1], [0], [0], [1], [0, 0, 1, 1], [], []>} : vector<16x128xbf16>, vector<128x128xbf16>, vector<16x128xf32> -> vector<16x128xf32>
    %58 = arith.addf %54, %57 : vector<16x128xf32>
    %c0_64 = arith.constant 0 : index
    %c0_65 = arith.constant 0 : index
    %59 = vector.load %arg15[%c0_64, %c0_65] : memref<1x128xf32, #tpu.memory_space<vmem>>, vector<1x128xf32>
    %60 = vector.broadcast %59 : vector<1x128xf32> to vector<16x128xf32>
    %61 = arith.mulf %58, %60 : vector<16x128xf32>
    %c0_66 = arith.constant 0 : index
    %c0_67 = arith.constant 0 : index
    %62 = vector.load %arg16[%c0_66, %c0_67] : memref<1x128xf32, #tpu.memory_space<vmem>>, vector<1x128xf32>
    %63 = vector.broadcast %62 : vector<1x128xf32> to vector<16x128xf32>
    %64 = arith.addf %61, %63 : vector<16x128xf32>
    %cst_68 = arith.constant 0.000000e+00 : f32
    %65 = vector.broadcast %cst_68 : f32 to vector<16x128xf32>
    %66 = arith.maximumf %64, %65 : vector<16x128xf32>
    %67 = arith.truncf %66 : vector<16x128xf32> to vector<16x128xbf16>
    %c1_69 = arith.constant 1 : index
    %c0_70 = arith.constant 0 : index
    %68 = vector.load %arg23[%c1_69, %c0_70] : memref<18x128xbf16, #tpu.memory_space<vmem>>, vector<16x128xbf16>
    tpu.vector_store %arg23[%c1_69, %c0_70], %67 {strides = array<i32>} : memref<18x128xbf16, #tpu.memory_space<vmem>>, vector<16x128xbf16>,
    %c0_71 = arith.constant 0 : index
    %c0_72 = arith.constant 0 : index
    %69 = vector.load %arg23[%c0_71, %c0_72] : memref<18x128xbf16, #tpu.memory_space<vmem>>, vector<16x128xbf16>
    %c0_73 = arith.constant 0 : index
    %c0_74 = arith.constant 0 : index
    %70 = vector.load %arg17[%c0_73, %c0_74] : memref<128x128xbf16, #tpu.memory_space<vmem>>, vector<128x128xbf16>
    %cst_75 = arith.constant dense<0.000000e+00> : vector<16x128xf32>
    %71 = tpu.matmul %69, %70, %cst_75 {dimension_numbers = #tpu.dot_dimension_numbers<[1], [0], [0], [1], [0, 0, 1, 1], [], []>} : vector<16x128xbf16>, vector<128x128xbf16>, vector<16x128xf32> -> vector<16x128xf32>
    %c1_76 = arith.constant 1 : index
    %c0_77 = arith.constant 0 : index
    %72 = vector.load %arg23[%c1_76, %c0_77] : memref<18x128xbf16, #tpu.memory_space<vmem>>, vector<16x128xbf16>
    %c0_78 = arith.constant 0 : index
    %c0_79 = arith.constant 0 : index
    %73 = vector.load %arg18[%c0_78, %c0_79] : memref<128x128xbf16, #tpu.memory_space<vmem>>, vector<128x128xbf16>
    %cst_80 = arith.constant dense<0.000000e+00> : vector<16x128xf32>
    %74 = tpu.matmul %72, %73, %cst_80 {dimension_numbers = #tpu.dot_dimension_numbers<[1], [0], [0], [1], [0, 0, 1, 1], [], []>} : vector<16x128xbf16>, vector<128x128xbf16>, vector<16x128xf32> -> vector<16x128xf32>
    %75 = arith.addf %71, %74 : vector<16x128xf32>
    %c2_81 = arith.constant 2 : index
    %c0_82 = arith.constant 0 : index
    %76 = vector.load %arg23[%c2_81, %c0_82] : memref<18x128xbf16, #tpu.memory_space<vmem>>, vector<16x128xbf16>
    %c0_83 = arith.constant 0 : index
    %c0_84 = arith.constant 0 : index
    %77 = vector.load %arg19[%c0_83, %c0_84] : memref<128x128xbf16, #tpu.memory_space<vmem>>, vector<128x128xbf16>
    %cst_85 = arith.constant dense<0.000000e+00> : vector<16x128xf32>
    %78 = tpu.matmul %76, %77, %cst_85 {dimension_numbers = #tpu.dot_dimension_numbers<[1], [0], [0], [1], [0, 0, 1, 1], [], []>} : vector<16x128xbf16>, vector<128x128xbf16>, vector<16x128xf32> -> vector<16x128xf32>
    %79 = arith.addf %75, %78 : vector<16x128xf32>
    %c0_86 = arith.constant 0 : index
    %c0_87 = arith.constant 0 : index
    %80 = vector.load %arg20[%c0_86, %c0_87] : memref<1x128xf32, #tpu.memory_space<vmem>>, vector<1x128xf32>
    %81 = vector.broadcast %80 : vector<1x128xf32> to vector<16x128xf32>
    %82 = arith.mulf %79, %81 : vector<16x128xf32>
    %c0_88 = arith.constant 0 : index
    %c0_89 = arith.constant 0 : index
    %83 = vector.load %arg21[%c0_88, %c0_89] : memref<1x128xf32, #tpu.memory_space<vmem>>, vector<1x128xf32>
    %84 = vector.broadcast %83 : vector<1x128xf32> to vector<16x128xf32>
    %85 = arith.addf %82, %84 : vector<16x128xf32>
    %cst_90 = arith.constant 0.000000e+00 : f32
    %86 = vector.broadcast %cst_90 : f32 to vector<16x128xf32>
    %87 = arith.maximumf %85, %86 : vector<16x128xf32>
    %88 = vector.shape_cast %87 : vector<16x128xf32> to vector<1x16x128xf32>
    %c0_91 = arith.constant 0 : index
    %c0_92 = arith.constant 0 : index
    %c0_93 = arith.constant 0 : index
    %89 = vector.load %arg22[%c0_91, %c0_92, %c0_93] : memref<1x16x128xf32, #tpu.memory_space<vmem>>, vector<1x16x128xf32>
    tpu.vector_store %arg22[%c0_91, %c0_92, %c0_93], %88 {strides = array<i32>} : memref<1x16x128xf32, #tpu.memory_space<vmem>>, vector<1x16x128xf32>,
    return
  }
  func.func @transform_0(%arg0: i32) -> (i32, i32, i32) {
    %c0_i32 = arith.constant 0 : i32
    %c0_i32_0 = arith.constant 0 : i32
    %c0_i32_1 = arith.constant 0 : i32
    return %arg0, %c0_i32, %c0_i32_0 : i32, i32, i32
  }
  func.func @transform_1(%arg0: i32) -> (i32, i32) {
    %c0_i32 = arith.constant 0 : i32
    %c0_i32_0 = arith.constant 0 : i32
    %c0_i32_1 = arith.constant 0 : i32
    return %c0_i32, %c0_i32_0 : i32, i32
  }
  func.func @transform_2(%arg0: i32) -> (i32, i32) {
    %c0_i32 = arith.constant 0 : i32
    %c0_i32_0 = arith.constant 0 : i32
    %c0_i32_1 = arith.constant 0 : i32
    return %c0_i32, %c0_i32_0 : i32, i32
  }
  func.func @transform_3(%arg0: i32) -> (i32, i32) {
    %c0_i32 = arith.constant 0 : i32
    %c0_i32_0 = arith.constant 0 : i32
    %c0_i32_1 = arith.constant 0 : i32
    return %c0_i32, %c0_i32_0 : i32, i32
  }
  func.func @transform_4(%arg0: i32) -> (i32, i32) {
    %c0_i32 = arith.constant 0 : i32
    %c0_i32_0 = arith.constant 0 : i32
    %c0_i32_1 = arith.constant 0 : i32
    return %c0_i32, %c0_i32_0 : i32, i32
  }
  func.func @transform_5(%arg0: i32) -> (i32, i32) {
    %c0_i32 = arith.constant 0 : i32
    %c0_i32_0 = arith.constant 0 : i32
    %c0_i32_1 = arith.constant 0 : i32
    return %c0_i32, %c0_i32_0 : i32, i32
  }
  func.func @transform_6(%arg0: i32) -> (i32, i32) {
    %c0_i32 = arith.constant 0 : i32
    %c0_i32_0 = arith.constant 0 : i32
    %c0_i32_1 = arith.constant 0 : i32
    return %c0_i32, %c0_i32_0 : i32, i32
  }
  func.func @transform_7(%arg0: i32) -> (i32, i32) {
    %c0_i32 = arith.constant 0 : i32
    %c0_i32_0 = arith.constant 0 : i32
    %c0_i32_1 = arith.constant 0 : i32
    return %c0_i32, %c0_i32_0 : i32, i32
  }
  func.func @transform_8(%arg0: i32) -> (i32, i32) {
    %c0_i32 = arith.constant 0 : i32
    %c0_i32_0 = arith.constant 0 : i32
    %c0_i32_1 = arith.constant 0 : i32
    return %c0_i32, %c0_i32_0 : i32, i32
  }
  func.func @transform_9(%arg0: i32) -> (i32, i32) {
    %c0_i32 = arith.constant 0 : i32
    %c0_i32_0 = arith.constant 0 : i32
    %c0_i32_1 = arith.constant 0 : i32
    return %c0_i32, %c0_i32_0 : i32, i32
  }
  func.func @transform_10(%arg0: i32) -> (i32, i32) {
    %c0_i32 = arith.constant 0 : i32
    %c0_i32_0 = arith.constant 0 : i32
    %c0_i32_1 = arith.constant 0 : i32
    return %c0_i32, %c0_i32_0 : i32, i32
  }
  func.func @transform_11(%arg0: i32) -> (i32, i32) {
    %c0_i32 = arith.constant 0 : i32
    %c0_i32_0 = arith.constant 0 : i32
    %c0_i32_1 = arith.constant 0 : i32
    return %c0_i32, %c0_i32_0 : i32, i32
  }
  func.func @transform_12(%arg0: i32) -> (i32, i32) {
    %c0_i32 = arith.constant 0 : i32
    %c0_i32_0 = arith.constant 0 : i32
    %c0_i32_1 = arith.constant 0 : i32
    return %c0_i32, %c0_i32_0 : i32, i32
  }
  func.func @transform_13(%arg0: i32) -> (i32, i32) {
    %c0_i32 = arith.constant 0 : i32
    %c0_i32_0 = arith.constant 0 : i32
    %c0_i32_1 = arith.constant 0 : i32
    return %c0_i32, %c0_i32_0 : i32, i32
  }
  func.func @transform_14(%arg0: i32) -> (i32, i32) {
    %c0_i32 = arith.constant 0 : i32
    %c0_i32_0 = arith.constant 0 : i32
    %c0_i32_1 = arith.constant 0 : i32
    return %c0_i32, %c0_i32_0 : i32, i32
  }
  func.func @transform_15(%arg0: i32) -> (i32, i32) {
    %c0_i32 = arith.constant 0 : i32
    %c0_i32_0 = arith.constant 0 : i32
    %c0_i32_1 = arith.constant 0 : i32
    return %c0_i32, %c0_i32_0 : i32, i32
  }
  func.func @transform_16(%arg0: i32) -> (i32, i32) {
    %c0_i32 = arith.constant 0 : i32
    %c0_i32_0 = arith.constant 0 : i32
    %c0_i32_1 = arith.constant 0 : i32
    return %c0_i32, %c0_i32_0 : i32, i32
  }
  func.func @transform_17(%arg0: i32) -> (i32, i32) {
    %c0_i32 = arith.constant 0 : i32
    %c0_i32_0 = arith.constant 0 : i32
    %c0_i32_1 = arith.constant 0 : i32
    return %c0_i32, %c0_i32_0 : i32, i32
  }
  func.func @transform_18(%arg0: i32) -> (i32, i32) {
    %c0_i32 = arith.constant 0 : i32
    %c0_i32_0 = arith.constant 0 : i32
    %c0_i32_1 = arith.constant 0 : i32
    return %c0_i32, %c0_i32_0 : i32, i32
  }
  func.func @transform_19(%arg0: i32) -> (i32, i32) {
    %c0_i32 = arith.constant 0 : i32
    %c0_i32_0 = arith.constant 0 : i32
    %c0_i32_1 = arith.constant 0 : i32
    return %c0_i32, %c0_i32_0 : i32, i32
  }
  func.func @transform_20(%arg0: i32) -> (i32, i32) {
    %c0_i32 = arith.constant 0 : i32
    %c0_i32_0 = arith.constant 0 : i32
    %c0_i32_1 = arith.constant 0 : i32
    return %c0_i32, %c0_i32_0 : i32, i32
  }
  func.func @transform_21(%arg0: i32) -> (i32, i32, i32) {
    %c0_i32 = arith.constant 0 : i32
    %c0_i32_0 = arith.constant 0 : i32
    %c0_i32_1 = arith.constant 0 : i32
    return %arg0, %c0_i32, %c0_i32_0 : i32, i32, i32
  }
}

</mosaic_0001>

<llo_original>
// kernel: nested_conv_block_forward.1
$region0: #{nested_conv_block_forward.1}
  #allocation0 [shape = 'u32[]', space=smem, size = 0x4, offset = 0x4, fixed_abs, tag = 'smem constant byte address 0x4 - core index']
  #allocation1 [shape = 'u32[144,128]{1,0:T(1,128)}', space=vmem, size = 0x12000, scoped, tag = 'internal scratch']
  #allocation2 [shape = 'bf16[18,128]{1,0:T(8,128)(2,1)}', space=vmem, size = 0x1800, scoped, tag = 'scratch operand']
  %s0 = inlined_call_operand.vmem [shape: bf16[2,16,128], index: 0, kind: input, shape index: {}]
  %s1 = inlined_call_operand.vmem [shape: bf16[128,128], index: 1, kind: input, shape index: {}]
  %s2 = inlined_call_operand.vmem [shape: bf16[128,128], index: 2, kind: input, shape index: {}]
  %s3 = inlined_call_operand.vmem [shape: bf16[128,128], index: 3, kind: input, shape index: {}]
  %s4 = inlined_call_operand.vmem [shape: f32[1,128], index: 4, kind: input, shape index: {}]
  %s5 = inlined_call_operand.vmem [shape: f32[1,128], index: 5, kind: input, shape index: {}]
  %s6 = inlined_call_operand.vmem [shape: bf16[128,128], index: 6, kind: input, shape index: {}]
  %s7 = inlined_call_operand.vmem [shape: bf16[128,128], index: 7, kind: input, shape index: {}]
  %s8 = inlined_call_operand.vmem [shape: bf16[128,128], index: 8, kind: input, shape index: {}]
  %s9 = inlined_call_operand.vmem [shape: f32[1,128], index: 9, kind: input, shape index: {}]
  %s10 = inlined_call_operand.vmem [shape: f32[1,128], index: 10, kind: input, shape index: {}]
  %s11 = inlined_call_operand.vmem [shape: bf16[128,128], index: 11, kind: input, shape index: {}]
  %s12 = inlined_call_operand.vmem [shape: bf16[128,128], index: 12, kind: input, shape index: {}]
  %s13 = inlined_call_operand.vmem [shape: bf16[128,128], index: 13, kind: input, shape index: {}]
  %s14 = inlined_call_operand.vmem [shape: f32[1,128], index: 14, kind: input, shape index: {}]
  %s15 = inlined_call_operand.vmem [shape: f32[1,128], index: 15, kind: input, shape index: {}]
  %s16 = inlined_call_operand.vmem [shape: bf16[128,128], index: 16, kind: input, shape index: {}]
  %s17 = inlined_call_operand.vmem [shape: bf16[128,128], index: 17, kind: input, shape index: {}]
  %s18 = inlined_call_operand.vmem [shape: bf16[128,128], index: 18, kind: input, shape index: {}]
  %s19 = inlined_call_operand.vmem [shape: f32[1,128], index: 19, kind: input, shape index: {}]
  %s20 = inlined_call_operand.vmem [shape: f32[1,128], index: 20, kind: input, shape index: {}]
  %s21 = inlined_call_operand.vmem [shape: f32[2,16,128], index: 21, kind: output, shape index: {}]
  %s22 = sld [smem:[#allocation0]]
  $region117: #{nested_conv_block_forward.1} parent=0
    _
  %s24 = ssub.s32 1, %s22
  %s25 = scalar_select 0, %s24, %s22
  loop: start=0, step=1, limit=4
  $region2: #{nested_conv_block_forward.1} parent=0 // loop_pre_header
    _
  $region3: #{nested_conv_block_forward.1} parent=0 // loop_header
    %s27 = sphi 0, %s31
    %p28 = scmp.ge.s32.totalorder %s27, 4
    %s37 = sphi 0, %s39
    %s40 = sphi 0, %s37
    %s41 = sphi 0, %s40
    %s57 = sphi 0, %s41
    %s61 = sphi 0, %s61
    %s63 = sphi 0, %s61
    %s64 = sphi 0, %s63
    %s78 = sphi 0, %s64
    %s82 = sphi 0, %s82
    %s84 = sphi 0, %s82
    %s85 = sphi 0, %s84
    %s99 = sphi 0, %s85
    %s103 = sphi 0, %s103
    %s105 = sphi 0, %s103
    %s106 = sphi 0, %s105
    %s120 = sphi 0, %s106
    %s124 = sphi 0, %s124
    %s126 = sphi 0, %s124
    %s127 = sphi 0, %s126
    %s141 = sphi 0, %s127
    %s145 = sphi 0, %s145
    %s147 = sphi 0, %s145
    %s148 = sphi 0, %s147
    %s162 = sphi 0, %s148
    %s166 = sphi 0, %s166
    %s168 = sphi 0, %s166
    %s169 = sphi 0, %s168
    %s183 = sphi 0, %s169
    %s187 = sphi 0, %s187
    %s189 = sphi 0, %s187
    %s190 = sphi 0, %s189
    %s204 = sphi 0, %s190
    %s208 = sphi 0, %s208
    %s210 = sphi 0, %s208
    %s211 = sphi 0, %s210
    %s225 = sphi 0, %s211
    %s229 = sphi 0, %s229
    %s231 = sphi 0, %s229
    %s232 = sphi 0, %s231
    %s246 = sphi 0, %s232
    %s250 = sphi 0, %s250
    %s252 = sphi 0, %s250
    %s253 = sphi 0, %s252
    %s267 = sphi 0, %s253
    %s271 = sphi 0, %s271
    %s273 = sphi 0, %s271
    %s274 = sphi 0, %s273
    %s288 = sphi 0, %s274
    %s292 = sphi 0, %s292
    %s294 = sphi 0, %s292
    %s295 = sphi 0, %s294
    %s309 = sphi 0, %s295
    %s313 = sphi 0, %s313
    %s315 = sphi 0, %s313
    %s316 = sphi 0, %s315
    %s330 = sphi 0, %s316
    %s334 = sphi 0, %s334
    %s336 = sphi 0, %s334
    %s337 = sphi 0, %s336
    %s351 = sphi 0, %s337
    %s355 = sphi 0, %s355
    %s357 = sphi 0, %s355
    %s358 = sphi 0, %s357
    %s372 = sphi 0, %s358
    %s376 = sphi 0, %s376
    %s378 = sphi 0, %s376
    %s379 = sphi 0, %s378
    %s393 = sphi 0, %s379
    %s397 = sphi 0, %s397
    %s399 = sphi 0, %s397
    %s400 = sphi 0, %s399
    %s414 = sphi 0, %s400
    %s418 = sphi 0, %s418
    %s420 = sphi 0, %s418
    %s421 = sphi 0, %s420
    %s435 = sphi 0, %s421
    %s439 = sphi 0, %s439
    %s441 = sphi 0, %s439
    %s442 = sphi 0, %s441
    %s456 = sphi 0, %s442
    %s460 = sphi 0, %s460
    %s462 = sphi 0, %s460
    %s463 = sphi 0, %s462
    %s477 = sphi 0, %s463
    %s483 = sphi 0, %s485
    %s486 = sphi 0, %s483
    %s487 = sphi 0, %s486
    %s503 = sphi 0, %s487
  $region4: #{nested_conv_block_forward.1} parent=0 // loop_header_branch
    %30 = sbr.rel (%p28) target = $region8
  $region5: #{nested_conv_block_forward.1} parent=0 // loop_body
    %s32 = ssub.s32 %s27, 1
    %s33 = ssub.s32 %s27, 2
    %s34 = sadd.s32 %s27, 1
    %s35 = ssub.s32 %s27, %s34
    %p36 = scmp.eq.s32.totalorder %s35, 0
    %s38 = sadd.s32 %s37, 1
    %s39 = scalar_select %p36, %s37, %s38
    %p42 = pneg %p36
    %p43 = scmp.eq.s32.totalorder %s27, 1
    %p44 = por %p42, %p43
    %p45 = scmp.ne.s32.totalorder %s37, %s40
    %p46 = scmp.eq.s32.totalorder %s27, 0
    %p47 = por %p45, %p46
    %p48 = scmp.ne.s32.totalorder %s37, %s40
    %p49 = scmp.eq.s32.totalorder %s32, 1
    %p50 = por %p48, %p49
    %p51 = scmp.ne.s32.totalorder %s40, %s41
    %p52 = scmp.eq.s32.totalorder %s32, 0
    %p53 = por %p51, %p52
    %p54 = scmp.ne.s32.totalorder %s40, %s41
    %p55 = scmp.eq.s32.totalorder %s33, 1
    %p56 = por %p54, %p55
    %p58 = scmp.ne.s32.totalorder %s41, %s57
    %p59 = scmp.eq.s32.totalorder %s33, 0
    %p60 = por %p58, %p59
    %s62 = sadd.s32 %s61, 1
    %p65 = scmp.eq.s32.totalorder %s27, 1
    %p66 = scmp.ne.s32.totalorder %s61, %s63
    %p67 = scmp.eq.s32.totalorder %s27, 0
    %p68 = por %p66, %p67
    %p69 = scmp.ne.s32.totalorder %s61, %s63
    %p70 = scmp.eq.s32.totalorder %s32, 1
    %p71 = por %p69, %p70
    %p72 = scmp.ne.s32.totalorder %s63, %s64
    %p73 = scmp.eq.s32.totalorder %s32, 0
    %p74 = por %p72, %p73
    %p75 = scmp.ne.s32.totalorder %s63, %s64
    %p76 = scmp.eq.s32.totalorder %s33, 1
    %p77 = por %p75, %p76
    %p79 = scmp.ne.s32.totalorder %s64, %s78
    %p80 = scmp.eq.s32.totalorder %s33, 0
    %p81 = por %p79, %p80
    %s83 = sadd.s32 %s82, 1
    %p86 = scmp.eq.s32.totalorder %s27, 1
    %p87 = scmp.ne.s32.totalorder %s82, %s84
    %p88 = scmp.eq.s32.totalorder %s27, 0
    %p89 = por %p87, %p88
    %p90 = scmp.ne.s32.totalorder %s82, %s84
    %p91 = scmp.eq.s32.totalorder %s32, 1
    %p92 = por %p90, %p91
    %p93 = scmp.ne.s32.totalorder %s84, %s85
    %p94 = scmp.eq.s32.totalorder %s32, 0
    %p95 = por %p93, %p94
    %p96 = scmp.ne.s32.totalorder %s84, %s85
    %p97 = scmp.eq.s32.totalorder %s33, 1
    %p98 = por %p96, %p97
    %p100 = scmp.ne.s32.totalorder %s85, %s99
    %p101 = scmp.eq.s32.totalorder %s33, 0
    %p102 = por %p100, %p101
    %s104 = sadd.s32 %s103, 1
    %p107 = scmp.eq.s32.totalorder %s27, 1
    %p108 = scmp.ne.s32.totalorder %s103, %s105
    %p109 = scmp.eq.s32.totalorder %s27, 0
    %p110 = por %p108, %p109
    %p111 = scmp.ne.s32.totalorder %s103, %s105
    %p112 = scmp.eq.s32.totalorder %s32, 1
    %p113 = por %p111, %p112
    %p114 = scmp.ne.s32.totalorder %s105, %s106
    %p115 = scmp.eq.s32.totalorder %s32, 0
    %p116 = por %p114, %p115
    %p117 = scmp.ne.s32.totalorder %s105, %s106
    %p118 = scmp.eq.s32.totalorder %s33, 1
    %p119 = por %p117, %p118
    %p121 = scmp.ne.s32.totalorder %s106, %s120
    %p122 = scmp.eq.s32.totalorder %s33, 0
    %p123 = por %p121, %p122
    %s125 = sadd.s32 %s124, 1
    %p128 = scmp.eq.s32.totalorder %s27, 1
    %p129 = scmp.ne.s32.totalorder %s124, %s126
    %p130 = scmp.eq.s32.totalorder %s27, 0
    %p131 = por %p129, %p130
    %p132 = scmp.ne.s32.totalorder %s124, %s126
    %p133 = scmp.eq.s32.totalorder %s32, 1
    %p134 = por %p132, %p133
    %p135 = scmp.ne.s32.totalorder %s126, %s127
    %p136 = scmp.eq.s32.totalorder %s32, 0
    %p137 = por %p135, %p136
    %p138 = scmp.ne.s32.totalorder %s126, %s127
    %p139 = scmp.eq.s32.totalorder %s33, 1
    %p140 = por %p138, %p139
    %p142 = scmp.ne.s32.totalorder %s127, %s141
    %p143 = scmp.eq.s32.totalorder %s33, 0
    %p144 = por %p142, %p143
    %s146 = sadd.s32 %s145, 1
    %p149 = scmp.eq.s32.totalorder %s27, 1
    %p150 = scmp.ne.s32.totalorder %s145, %s147
    %p151 = scmp.eq.s32.totalorder %s27, 0
    %p152 = por %p150, %p151
    %p153 = scmp.ne.s32.totalorder %s145, %s147
    %p154 = scmp.eq.s32.totalorder %s32, 1
    %p155 = por %p153, %p154
    %p156 = scmp.ne.s32.totalorder %s147, %s148
    %p157 = scmp.eq.s32.totalorder %s32, 0
    %p158 = por %p156, %p157
    %p159 = scmp.ne.s32.totalorder %s147, %s148
    %p160 = scmp.eq.s32.totalorder %s33, 1
    %p161 = por %p159, %p160
    %p163 = scmp.ne.s32.totalorder %s148, %s162
    %p164 = scmp.eq.s32.totalorder %s33, 0
    %p165 = por %p163, %p164
    %s167 = sadd.s32 %s166, 1
    %p170 = scmp.eq.s32.totalorder %s27, 1
    %p171 = scmp.ne.s32.totalorder %s166, %s168
    %p172 = scmp.eq.s32.totalorder %s27, 0
    %p173 = por %p171, %p172
    %p174 = scmp.ne.s32.totalorder %s166, %s168
    %p175 = scmp.eq.s32.totalorder %s32, 1
    %p176 = por %p174, %p175
    %p177 = scmp.ne.s32.totalorder %s168, %s169
    %p178 = scmp.eq.s32.totalorder %s32, 0
    %p179 = por %p177, %p178
    %p180 = scmp.ne.s32.totalorder %s168, %s169
    %p181 = scmp.eq.s32.totalorder %s33, 1
    %p182 = por %p180, %p181
    %p184 = scmp.ne.s32.totalorder %s169, %s183
    %p185 = scmp.eq.s32.totalorder %s33, 0
    %p186 = por %p184, %p185
    %s188 = sadd.s32 %s187, 1
    %p191 = scmp.eq.s32.totalorder %s27, 1
    %p192 = scmp.ne.s32.totalorder %s187, %s189
    %p193 = scmp.eq.s32.totalorder %s27, 0
    %p194 = por %p192, %p193
    %p195 = scmp.ne.s32.totalorder %s187, %s189
    %p196 = scmp.eq.s32.totalorder %s32, 1
    %p197 = por %p195, %p196
    %p198 = scmp.ne.s32.totalorder %s189, %s190
    %p199 = scmp.eq.s32.totalorder %s32, 0
    %p200 = por %p198, %p199
    %p201 = scmp.ne.s32.totalorder %s189, %s190
    %p202 = scmp.eq.s32.totalorder %s33, 1
    %p203 = por %p201, %p202
    %p205 = scmp.ne.s32.totalorder %s190, %s204
    %p206 = scmp.eq.s32.totalorder %s33, 0
    %p207 = por %p205, %p206
    %s209 = sadd.s32 %s208, 1
    %p212 = scmp.eq.s32.totalorder %s27, 1
    %p213 = scmp.ne.s32.totalorder %s208, %s210
    %p214 = scmp.eq.s32.totalorder %s27, 0
    %p215 = por %p213, %p214
    %p216 = scmp.ne.s32.totalorder %s208, %s210
    %p217 = scmp.eq.s32.totalorder %s32, 1
    %p218 = por %p216, %p217
    %p219 = scmp.ne.s32.totalorder %s210, %s211
    %p220 = scmp.eq.s32.totalorder %s32, 0
    %p221 = por %p219, %p220
    %p222 = scmp.ne.s32.totalorder %s210, %s211
    %p223 = scmp.eq.s32.totalorder %s33, 1
    %p224 = por %p222, %p223
    %p226 = scmp.ne.s32.totalorder %s211, %s225
    %p227 = scmp.eq.s32.totalorder %s33, 0
    %p228 = por %p226, %p227
    %s230 = sadd.s32 %s229, 1
    %p233 = scmp.eq.s32.totalorder %s27, 1
    %p234 = scmp.ne.s32.totalorder %s229, %s231
    %p235 = scmp.eq.s32.totalorder %s27, 0
    %p236 = por %p234, %p235
    %p237 = scmp.ne.s32.totalorder %s229, %s231
    %p238 = scmp.eq.s32.totalorder %s32, 1
    %p239 = por %p237, %p238
    %p240 = scmp.ne.s32.totalorder %s231, %s232
    %p241 = scmp.eq.s32.totalorder %s32, 0
    %p242 = por %p240, %p241
    %p243 = scmp.ne.s32.totalorder %s231, %s232
    %p244 = scmp.eq.s32.totalorder %s33, 1
    %p245 = por %p243, %p244
    %p247 = scmp.ne.s32.totalorder %s232, %s246
    %p248 = scmp.eq.s32.totalorder %s33, 0
    %p249 = por %p247, %p248
    %s251 = sadd.s32 %s250, 1
    %p254 = scmp.eq.s32.totalorder %s27, 1
    %p255 = scmp.ne.s32.totalorder %s250, %s252
    %p256 = scmp.eq.s32.totalorder %s27, 0
    %p257 = por %p255, %p256
    %p258 = scmp.ne.s32.totalorder %s250, %s252
    %p259 = scmp.eq.s32.totalorder %s32, 1
    %p260 = por %p258, %p259
    %p261 = scmp.ne.s32.totalorder %s252, %s253
    %p262 = scmp.eq.s32.totalorder %s32, 0
    %p263 = por %p261, %p262
    %p264 = scmp.ne.s32.totalorder %s252, %s253
    %p265 = scmp.eq.s32.totalorder %s33, 1
    %p266 = por %p264, %p265
    %p268 = scmp.ne.s32.totalorder %s253, %s267
    %p269 = scmp.eq.s32.totalorder %s33, 0
    %p270 = por %p268, %p269
    %s272 = sadd.s32 %s271, 1
    %p275 = scmp.eq.s32.totalorder %s27, 1
    %p276 = scmp.ne.s32.totalorder %s271, %s273
    %p277 = scmp.eq.s32.totalorder %s27, 0
    %p278 = por %p276, %p277
    %p279 = scmp.ne.s32.totalorder %s271, %s273
    %p280 = scmp.eq.s32.totalorder %s32, 1
    %p281 = por %p279, %p280
    %p282 = scmp.ne.s32.totalorder %s273, %s274
    %p283 = scmp.eq.s32.totalorder %s32, 0
    %p284 = por %p282, %p283
    %p285 = scmp.ne.s32.totalorder %s273, %s274
    %p286 = scmp.eq.s32.totalorder %s33, 1
    %p287 = por %p285, %p286
    %p289 = scmp.ne.s32.totalorder %s274, %s288
    %p290 = scmp.eq.s32.totalorder %s33, 0
    %p291 = por %p289, %p290
    %s293 = sadd.s32 %s292, 1
    %p296 = scmp.eq.s32.totalorder %s27, 1
    %p297 = scmp.ne.s32.totalorder %s292, %s294
    %p298 = scmp.eq.s32.totalorder %s27, 0
    %p299 = por %p297, %p298
    %p300 = scmp.ne.s32.totalorder %s292, %s294
    %p301 = scmp.eq.s32.totalorder %s32, 1
    %p302 = por %p300, %p301
    %p303 = scmp.ne.s32.totalorder %s294, %s295
    %p304 = scmp.eq.s32.totalorder %s32, 0
    %p305 = por %p303, %p304
    %p306 = scmp.ne.s32.totalorder %s294, %s295
    %p307 = scmp.eq.s32.totalorder %s33, 1
    %p308 = por %p306, %p307
    %p310 = scmp.ne.s32.totalorder %s295, %s309
    %p311 = scmp.eq.s32.totalorder %s33, 0
    %p312 = por %p310, %p311
    %s314 = sadd.s32 %s313, 1
    %p317 = scmp.eq.s32.totalorder %s27, 1
    %p318 = scmp.ne.s32.totalorder %s313, %s315
    %p319 = scmp.eq.s32.totalorder %s27, 0
    %p320 = por %p318, %p319
    %p321 = scmp.ne.s32.totalorder %s313, %s315
    %p322 = scmp.eq.s32.totalorder %s32, 1
    %p323 = por %p321, %p322
    %p324 = scmp.ne.s32.totalorder %s315, %s316
    %p325 = scmp.eq.s32.totalorder %s32, 0
    %p326 = por %p324, %p325
    %p327 = scmp.ne.s32.totalorder %s315, %s316
    %p328 = scmp.eq.s32.totalorder %s33, 1
    %p329 = por %p327, %p328
    %p331 = scmp.ne.s32.totalorder %s316, %s330
    %p332 = scmp.eq.s32.totalorder %s33, 0
    %p333 = por %p331, %p332
    %s335 = sadd.s32 %s334, 1
    %p338 = scmp.eq.s32.totalorder %s27, 1
    %p339 = scmp.ne.s32.totalorder %s334, %s336
    %p340 = scmp.eq.s32.totalorder %s27, 0
    %p341 = por %p339, %p340
    %p342 = scmp.ne.s32.totalorder %s334, %s336
    %p343 = scmp.eq.s32.totalorder %s32, 1
    %p344 = por %p342, %p343
    %p345 = scmp.ne.s32.totalorder %s336, %s337
    %p346 = scmp.eq.s32.totalorder %s32, 0
    %p347 = por %p345, %p346
    %p348 = scmp.ne.s32.totalorder %s336, %s337
    %p349 = scmp.eq.s32.totalorder %s33, 1
    %p350 = por %p348, %p349
    %p352 = scmp.ne.s32.totalorder %s337, %s351
    %p353 = scmp.eq.s32.totalorder %s33, 0
    %p354 = por %p352, %p353
    %s356 = sadd.s32 %s355, 1
    %p359 = scmp.eq.s32.totalorder %s27, 1
    %p360 = scmp.ne.s32.totalorder %s355, %s357
    %p361 = scmp.eq.s32.totalorder %s27, 0
    %p362 = por %p360, %p361
    %p363 = scmp.ne.s32.totalorder %s355, %s357
    %p364 = scmp.eq.s32.totalorder %s32, 1
    %p365 = por %p363, %p364
    %p366 = scmp.ne.s32.totalorder %s357, %s358
    %p367 = scmp.eq.s32.totalorder %s32, 0
    %p368 = por %p366, %p367
    %p369 = scmp.ne.s32.totalorder %s357, %s358
    %p370 = scmp.eq.s32.totalorder %s33, 1
    %p371 = por %p369, %p370
    %p373 = scmp.ne.s32.totalorder %s358, %s372
    %p374 = scmp.eq.s32.totalorder %s33, 0
    %p375 = por %p373, %p374
    %s377 = sadd.s32 %s376, 1
    %p380 = scmp.eq.s32.totalorder %s27, 1
    %p381 = scmp.ne.s32.totalorder %s376, %s378
    %p382 = scmp.eq.s32.totalorder %s27, 0
    %p383 = por %p381, %p382
    %p384 = scmp.ne.s32.totalorder %s376, %s378
    %p385 = scmp.eq.s32.totalorder %s32, 1
    %p386 = por %p384, %p385
    %p387 = scmp.ne.s32.totalorder %s378, %s379
    %p388 = scmp.eq.s32.totalorder %s32, 0
    %p389 = por %p387, %p388
    %p390 = scmp.ne.s32.totalorder %s378, %s379
    %p391 = scmp.eq.s32.totalorder %s33, 1
    %p392 = por %p390, %p391
    %p394 = scmp.ne.s32.totalorder %s379, %s393
    %p395 = scmp.eq.s32.totalorder %s33, 0
    %p396 = por %p394, %p395
    %s398 = sadd.s32 %s397, 1
    %p401 = scmp.eq.s32.totalorder %s27, 1
    %p402 = scmp.ne.s32.totalorder %s397, %s399
    %p403 = scmp.eq.s32.totalorder %s27, 0
    %p404 = por %p402, %p403
    %p405 = scmp.ne.s32.totalorder %s397, %s399
    %p406 = scmp.eq.s32.totalorder %s32, 1
    %p407 = por %p405, %p406
    %p408 = scmp.ne.s32.totalorder %s399, %s400
    %p409 = scmp.eq.s32.totalorder %s32, 0
    %p410 = por %p408, %p409
    %p411 = scmp.ne.s32.totalorder %s399, %s400
    %p412 = scmp.eq.s32.totalorder %s33, 1
    %p413 = por %p411, %p412
    %p415 = scmp.ne.s32.totalorder %s400, %s414
    %p416 = scmp.eq.s32.totalorder %s33, 0
    %p417 = por %p415, %p416
    %s419 = sadd.s32 %s418, 1
    %p422 = scmp.eq.s32.totalorder %s27, 1
    %p423 = scmp.ne.s32.totalorder %s418, %s420
    %p424 = scmp.eq.s32.totalorder %s27, 0
    %p425 = por %p423, %p424
    %p426 = scmp.ne.s32.totalorder %s418, %s420
    %p427 = scmp.eq.s32.totalorder %s32, 1
    %p428 = por %p426, %p427
    %p429 = scmp.ne.s32.totalorder %s420, %s421
    %p430 = scmp.eq.s32.totalorder %s32, 0
    %p431 = por %p429, %p430
    %p432 = scmp.ne.s32.totalorder %s420, %s421
    %p433 = scmp.eq.s32.totalorder %s33, 1
    %p434 = por %p432, %p433
    %p436 = scmp.ne.s32.totalorder %s421, %s435
    %p437 = scmp.eq.s32.totalorder %s33, 0
    %p438 = por %p436, %p437
    %s440 = sadd.s32 %s439, 1
    %p443 = scmp.eq.s32.totalorder %s27, 1
    %p444 = scmp.ne.s32.totalorder %s439, %s441
    %p445 = scmp.eq.s32.totalorder %s27, 0
    %p446 = por %p444, %p445
    %p447 = scmp.ne.s32.totalorder %s439, %s441
    %p448 = scmp.eq.s32.totalorder %s32, 1
    %p449 = por %p447, %p448
    %p450 = scmp.ne.s32.totalorder %s441, %s442
    %p451 = scmp.eq.s32.totalorder %s32, 0
    %p452 = por %p450, %p451
    %p453 = scmp.ne.s32.totalorder %s441, %s442
    %p454 = scmp.eq.s32.totalorder %s33, 1
    %p455 = por %p453, %p454
    %p457 = scmp.ne.s32.totalorder %s442, %s456
    %p458 = scmp.eq.s32.totalorder %s33, 0
    %p459 = por %p457, %p458
    %s461 = sadd.s32 %s460, 1
    %p464 = scmp.eq.s32.totalorder %s27, 1
    %p465 = scmp.ne.s32.totalorder %s460, %s462
    %p466 = scmp.eq.s32.totalorder %s27, 0
    %p467 = por %p465, %p466
    %p468 = scmp.ne.s32.totalorder %s460, %s462
    %p469 = scmp.eq.s32.totalorder %s32, 1
    %p470 = por %p468, %p469
    %p471 = scmp.ne.s32.totalorder %s462, %s463
    %p472 = scmp.eq.s32.totalorder %s32, 0
    %p473 = por %p471, %p472
    %p474 = scmp.ne.s32.totalorder %s462, %s463
    %p475 = scmp.eq.s32.totalorder %s33, 1
    %p476 = por %p474, %p475
    %p478 = scmp.ne.s32.totalorder %s463, %s477
    %p479 = scmp.eq.s32.totalorder %s33, 0
    %p480 = por %p478, %p479
    %s481 = ssub.s32 %s27, %s34
    %p482 = scmp.eq.s32.totalorder %s481, 0
    %s484 = sadd.s32 %s483, 1
    %s485 = scalar_select %p482, %s483, %s484
    %p488 = pneg %p482
    %p489 = scmp.eq.s32.totalorder %s27, 1
    %p490 = por %p488, %p489
    %p491 = scmp.ne.s32.totalorder %s483, %s486
    %p492 = scmp.eq.s32.totalorder %s27, 0
    %p493 = por %p491, %p492
    %p494 = scmp.ne.s32.totalorder %s483, %s486
    %p495 = scmp.eq.s32.totalorder %s32, 1
    %p496 = por %p494, %p495
    %p497 = scmp.ne.s32.totalorder %s486, %s487
    %p498 = scmp.eq.s32.totalorder %s32, 0
    %p499 = por %p497, %p498
    %p500 = scmp.ne.s32.totalorder %s486, %s487
    %p501 = scmp.eq.s32.totalorder %s33, 1
    %p502 = por %p500, %p501
    %p504 = scmp.ne.s32.totalorder %s487, %s503
    %p505 = scmp.eq.s32.totalorder %s33, 0
    %p506 = por %p504, %p505
    %p507 = scmp.le.s32.totalorder 1, %s27
    %p508 = scmp.lt.s32.totalorder %s27, 3
    %p509 = pnand %p507, %p508
    %p510 = pneg %p509
    // Predicated region
    $region9: #{nested_conv_block_forward.1} parent=5 // pred_check
      _
    $region10: #{nested_conv_block_forward.1} parent=5 // pred_check_branch
      %512 = sbr.rel (%p509) target = $region12
    $region11: #{nested_conv_block_forward.1} parent=5 // pred_region
      %s513 = ssub.s32 %s27, 1
      // Predicated region
      $region13: #{nested_conv_block_forward.1} parent=11 // pred_check
        %p514 = pneg %p74
      $region14: #{nested_conv_block_forward.1} parent=11 // pred_check_branch
        %516 = sbr.rel (%p514) target = $region16
      $region15: #{nested_conv_block_forward.1} parent=11 // pred_region
        _
      $region16: #{nested_conv_block_forward.1} parent=11 // pred_fallthru
        _
      // Predicated region
      $region17: #{nested_conv_block_forward.1} parent=11 // pred_check
        %p517 = pneg %p95
      $region18: #{nested_conv_block_forward.1} parent=11 // pred_check_branch
        %519 = sbr.rel (%p517) target = $region20
      $region19: #{nested_conv_block_forward.1} parent=11 // pred_region
        _
      $region20: #{nested_conv_block_forward.1} parent=11 // pred_fallthru
        _
      // Predicated region
      $region21: #{nested_conv_block_forward.1} parent=11 // pred_check
        %p520 = pneg %p116
      $region22: #{nested_conv_block_forward.1} parent=11 // pred_check_branch
        %522 = sbr.rel (%p520) target = $region24
      $region23: #{nested_conv_block_forward.1} parent=11 // pred_region
        _
      $region24: #{nested_conv_block_forward.1} parent=11 // pred_fallthru
        _
      // Predicated region
      $region25: #{nested_conv_block_forward.1} parent=11 // pred_check
        %p523 = pneg %p137
      $region26: #{nested_conv_block_forward.1} parent=11 // pred_check_branch
        %525 = sbr.rel (%p523) target = $region28
      $region27: #{nested_conv_block_forward.1} parent=11 // pred_region
        _
      $region28: #{nested_conv_block_forward.1} parent=11 // pred_fallthru
        _
      // Predicated region
      $region29: #{nested_conv_block_forward.1} parent=11 // pred_check
        %p526 = pneg %p158
      $region30: #{nested_conv_block_forward.1} parent=11 // pred_check_branch
        %528 = sbr.rel (%p526) target = $region32
      $region31: #{nested_conv_block_forward.1} parent=11 // pred_region
        _
      $region32: #{nested_conv_block_forward.1} parent=11 // pred_fallthru
        _
      // Predicated region
      $region33: #{nested_conv_block_forward.1} parent=11 // pred_check
        %p529 = pneg %p179
      $region34: #{nested_conv_block_forward.1} parent=11 // pred_check_branch
        %531 = sbr.rel (%p529) target = $region36
      $region35: #{nested_conv_block_forward.1} parent=11 // pred_region
        _
      $region36: #{nested_conv_block_forward.1} parent=11 // pred_fallthru
        _
      // Predicated region
      $region37: #{nested_conv_block_forward.1} parent=11 // pred_check
        %p532 = pneg %p200
      $region38: #{nested_conv_block_forward.1} parent=11 // pred_check_branch
        %534 = sbr.rel (%p532) target = $region40
      $region39: #{nested_conv_block_forward.1} parent=11 // pred_region
        _
      $region40: #{nested_conv_block_forward.1} parent=11 // pred_fallthru
        _
      // Predicated region
      $region41: #{nested_conv_block_forward.1} parent=11 // pred_check
        %p535 = pneg %p221
      $region42: #{nested_conv_block_forward.1} parent=11 // pred_check_branch
        %537 = sbr.rel (%p535) target = $region44
      $region43: #{nested_conv_block_forward.1} parent=11 // pred_region
        _
      $region44: #{nested_conv_block_forward.1} parent=11 // pred_fallthru
        _
      // Predicated region
      $region45: #{nested_conv_block_forward.1} parent=11 // pred_check
        %p538 = pneg %p242
      $region46: #{nested_conv_block_forward.1} parent=11 // pred_check_branch
        %540 = sbr.rel (%p538) target = $region48
      $region47: #{nested_conv_block_forward.1} parent=11 // pred_region
        _
      $region48: #{nested_conv_block_forward.1} parent=11 // pred_fallthru
        _
      // Predicated region
      $region49: #{nested_conv_block_forward.1} parent=11 // pred_check
        %p541 = pneg %p263
      $region50: #{nested_conv_block_forward.1} parent=11 // pred_check_branch
        %543 = sbr.rel (%p541) target = $region52
      $region51: #{nested_conv_block_forward.1} parent=11 // pred_region
        _
      $region52: #{nested_conv_block_forward.1} parent=11 // pred_fallthru
        _
      // Predicated region
      $region53: #{nested_conv_block_forward.1} parent=11 // pred_check
        %p544 = pneg %p284
      $region54: #{nested_conv_block_forward.1} parent=11 // pred_check_branch
        %546 = sbr.rel (%p544) target = $region56
      $region55: #{nested_conv_block_forward.1} parent=11 // pred_region
        _
      $region56: #{nested_conv_block_forward.1} parent=11 // pred_fallthru
        _
      // Predicated region
      $region57: #{nested_conv_block_forward.1} parent=11 // pred_check
        %p547 = pneg %p305
      $region58: #{nested_conv_block_forward.1} parent=11 // pred_check_branch
        %549 = sbr.rel (%p547) target = $region60
      $region59: #{nested_conv_block_forward.1} parent=11 // pred_region
        _
      $region60: #{nested_conv_block_forward.1} parent=11 // pred_fallthru
        _
      // Predicated region
      $region61: #{nested_conv_block_forward.1} parent=11 // pred_check
        %p550 = pneg %p326
      $region62: #{nested_conv_block_forward.1} parent=11 // pred_check_branch
        %552 = sbr.rel (%p550) target = $region64
      $region63: #{nested_conv_block_forward.1} parent=11 // pred_region
        _
      $region64: #{nested_conv_block_forward.1} parent=11 // pred_fallthru
        _
      // Predicated region
      $region65: #{nested_conv_block_forward.1} parent=11 // pred_check
        %p553 = pneg %p347
      $region66: #{nested_conv_block_forward.1} parent=11 // pred_check_branch
        %555 = sbr.rel (%p553) target = $region68
      $region67: #{nested_conv_block_forward.1} parent=11 // pred_region
        _
      $region68: #{nested_conv_block_forward.1} parent=11 // pred_fallthru
        _
      // Predicated region
      $region69: #{nested_conv_block_forward.1} parent=11 // pred_check
        %p556 = pneg %p368
      $region70: #{nested_conv_block_forward.1} parent=11 // pred_check_branch
        %558 = sbr.rel (%p556) target = $region72
      $region71: #{nested_conv_block_forward.1} parent=11 // pred_region
        _
      $region72: #{nested_conv_block_forward.1} parent=11 // pred_fallthru
        _
      // Predicated region
      $region73: #{nested_conv_block_forward.1} parent=11 // pred_check
        %p559 = pneg %p389
      $region74: #{nested_conv_block_forward.1} parent=11 // pred_check_branch
        %561 = sbr.rel (%p559) target = $region76
      $region75: #{nested_conv_block_forward.1} parent=11 // pred_region
        _
      $region76: #{nested_conv_block_forward.1} parent=11 // pred_fallthru
        _
      // Predicated region
      $region77: #{nested_conv_block_forward.1} parent=11 // pred_check
        %p562 = pneg %p410
      $region78: #{nested_conv_block_forward.1} parent=11 // pred_check_branch
        %564 = sbr.rel (%p562) target = $region80
      $region79: #{nested_conv_block_forward.1} parent=11 // pred_region
        _
      $region80: #{nested_conv_block_forward.1} parent=11 // pred_fallthru
        _
      // Predicated region
      $region81: #{nested_conv_block_forward.1} parent=11 // pred_check
        %p565 = pneg %p431
      $region82: #{nested_conv_block_forward.1} parent=11 // pred_check_branch
        %567 = sbr.rel (%p565) target = $region84
      $region83: #{nested_conv_block_forward.1} parent=11 // pred_region
        _
      $region84: #{nested_conv_block_forward.1} parent=11 // pred_fallthru
        _
      // Predicated region
      $region85: #{nested_conv_block_forward.1} parent=11 // pred_check
        %p568 = pneg %p452
      $region86: #{nested_conv_block_forward.1} parent=11 // pred_check_branch
        %570 = sbr.rel (%p568) target = $region88
      $region87: #{nested_conv_block_forward.1} parent=11 // pred_region
        _
      $region88: #{nested_conv_block_forward.1} parent=11 // pred_fallthru
        _
      // Predicated region
      $region89: #{nested_conv_block_forward.1} parent=11 // pred_check
        %p571 = pneg %p473
      $region90: #{nested_conv_block_forward.1} parent=11 // pred_check_branch
        %573 = sbr.rel (%p571) target = $region92
      $region91: #{nested_conv_block_forward.1} parent=11 // pred_region
        _
      $region92: #{nested_conv_block_forward.1} parent=11 // pred_fallthru
        _
    $region12: #{nested_conv_block_forward.1} parent=5 // pred_fallthru
      _
    %p574 = scmp.lt.s32.totalorder %s27, 2
    // Predicated region
    $region93: #{nested_conv_block_forward.1} parent=5 // pred_check
      %p575 = pneg %p574
    $region94: #{nested_conv_block_forward.1} parent=5 // pred_check_branch
      %577 = sbr.rel (%p575) target = $region96
    $region95: #{nested_conv_block_forward.1} parent=5 // pred_region
      // Predicated region
      $region97: #{nested_conv_block_forward.1} parent=95 // pred_check
        %p578 = pneg %p47
      $region98: #{nested_conv_block_forward.1} parent=95 // pred_check_branch
        %580 = sbr.rel (%p578) target = $region100
      $region99: #{nested_conv_block_forward.1} parent=95 // pred_region
        %p581 = scmp.lt.s32.totalorder %s27, 1
        %s582 = scalar_select %p581, %s27, 1
        %s583 = smul.addr %s582, 2
        %s584 = smul.addr %s583, 4
        %s585 = scalar_lea.vmem %s0, %s584
      $region100: #{nested_conv_block_forward.1} parent=95 // pred_fallthru
        _
    $region96: #{nested_conv_block_forward.1} parent=5 // pred_fallthru
      _
    %p586 = scmp.le.s32.totalorder 1, %s27
    %p587 = scmp.lt.s32.totalorder %s27, 3
    %p588 = pnand %p586, %p587
    %p589 = pneg %p588
    // Predicated region
    $region101: #{nested_conv_block_forward.1} parent=5 // pred_check
      _
    $region102: #{nested_conv_block_forward.1} parent=5 // pred_check_branch
      %591 = sbr.rel (%p588) target = $region104
    $region103: #{nested_conv_block_forward.1} parent=5 // pred_region
      %s592 = ssub.s32 %s27, 1
      %p593 = scmp.lt.s32.totalorder %s32, 1
      %s594 = scalar_select %p593, %s32, 1
      %s595 = smul.addr %s594, 2
      %s596 = smul.addr %s595, 4
      %s597 = scalar_lea.vmem %s0, %s596
      %p598 = pneg %p53
      %p599 = pneg %p50
      %p600 = pneg %p74
      %p601 = pneg %p71
      %p602 = pneg %p95
      %p603 = pneg %p92
      %p604 = pneg %p116
      %p605 = pneg %p113
      %p606 = pneg %p137
      %p607 = pneg %p134
      %p608 = pneg %p158
      %p609 = pneg %p155
      %p610 = pneg %p179
      %p611 = pneg %p176
      %p612 = pneg %p200
      %p613 = pneg %p197
      %p614 = pneg %p221
      %p615 = pneg %p218
      %p616 = pneg %p242
      %p617 = pneg %p239
      %p618 = pneg %p263
      %p619 = pneg %p260
      %p620 = pneg %p284
      %p621 = pneg %p281
      %p622 = pneg %p305
      %p623 = pneg %p302
      %p624 = pneg %p326
      %p625 = pneg %p323
      %p626 = pneg %p347
      %p627 = pneg %p344
      %p628 = pneg %p368
      %p629 = pneg %p365
      %p630 = pneg %p389
      %p631 = pneg %p386
      %p632 = pneg %p410
      %p633 = pneg %p407
      %p634 = pneg %p431
      %p635 = pneg %p428
      %p636 = pneg %p452
      %p637 = pneg %p449
      %p638 = pneg %p473
      %p639 = pneg %p470
      %p640 = pneg %p499
      %p641 = pneg %p496
      %p642 = scmp.lt.s32.totalorder %s32, 1
      %s643 = scalar_select %p642, %s32, 1
      %s644 = smul.addr %s643, 2
      %s645 = smul.addr %s644, 8
      %s646 = scalar_lea.vmem %s21, %s645
      %p647 = scmp.lt.s32.totalorder %s32, 1
      %s648 = scalar_select %p647, %s32, 1
      %s649 = smul.addr %s648, 2
      %s650 = smul.addr %s649, 4
      %s651 = scalar_lea.vmem %s0, %s650
      %p652 = scmp.lt.s32.totalorder %s32, 1
      %s653 = scalar_select %p652, %s32, 1
      %s654 = smul.addr %s653, 2
      %s655 = smul.addr %s654, 8
      %s656 = scalar_lea.vmem %s21, %s655
      %vm658 = vcmask 1040384
      %vm659 = vsmask.f32 256
      %vm660 = vmand %vm658, %vm659
      %v661 = vld [vmem:[#allocation2] sm:$0x1]
      %v662 = vsel %vm660, 0, %v661
      %663 = vst [vmem:[#allocation2] sm:$0x1] %v662
      %vm664 = vsmask.f32 7938
      %vm665 = vmand %vm658, %vm664
      %v666 = vld [vmem:[#allocation2 + $0x8] sm:$0x1]
      %v667 = vsel %vm665, 0, %v666
      %668 = vst [vmem:[#allocation2 + $0x8] sm:$0x1] %v667
      %v669 = vld [vmem:[%s651] sm:$0xf]
      %v670 = vld [vmem:[%s651 + $0x4] sm:$0xf]
      %vm671 = vsmask.f32 4368
      %vm672 = vmor %vm659, %vm671
      %v674 = vshrl.u32 %v669, 16
      %v676 = vrot.slane %v674, 7
      %v677 = vshll.u32 %v669, 16
      %v679 = vor.u32 %v676, %v677
      %v680 = vrot.slane %v676, 4
      %v682 = vshrl.u32 %v670, 16
      %v684 = vrot.slane %v682, 7
      %v685 = vshll.u32 %v670, 16
      %v687 = vor.u32 %v684, %v685
      %v688 = vsel %vm672, %v680, %v687
      %v689 = vrot.slane %v684, 4
      %vm693 = vcmask 1043456
      %vm694 = vmand %vm693, %vm664
      %v695 = vld [vmem:[#allocation2] sm:$0xf]
      %v696 = vsel %vm694, %v679, %v695
      %697 = vst [vmem:[#allocation2] sm:$0xf] %v696
      %698 = vst [vmem:[#allocation2 + $0x4] sm:$0xf] %v688
      %v699 = vld [vmem:[#allocation2 + $0x8] sm:$0x1]
      %v700 = vsel %vm660, %v689, %v699
      %701 = vst [vmem:[#allocation2 + $0x8] sm:$0x1] %v700
      %v702 = vld [vmem:[#allocation2] sm:$0xf]
      %v703 = vld [vmem:[#allocation2 + $0x4] sm:$0xf]
      %v704 = vld [vmem:[%s1] sm:$0xf]
      %v705 = vld [vmem:[%s1 + $0x4] sm:$0xf]
      %v706 = vld [vmem:[%s1 + $0x8] sm:$0xf]
      %v707 = vld [vmem:[%s1 + $0xc] sm:$0xf]
      %v708 = vld [vmem:[%s1 + $0x10] sm:$0xf]
      %v709 = vld [vmem:[%s1 + $0x14] sm:$0xf]
      %v710 = vld [vmem:[%s1 + $0x18] sm:$0xf]
      %v711 = vld [vmem:[%s1 + $0x1c] sm:$0xf]
      %v712 = vld [vmem:[%s1 + $0x20] sm:$0xf]
      %v713 = vld [vmem:[%s1 + $0x24] sm:$0xf]
      %v714 = vld [vmem:[%s1 + $0x28] sm:$0xf]
      %v715 = vld [vmem:[%s1 + $0x2c] sm:$0xf]
      %v716 = vld [vmem:[%s1 + $0x30] sm:$0xf]
      %v717 = vld [vmem:[%s1 + $0x34] sm:$0xf]
      %v718 = vld [vmem:[%s1 + $0x38] sm:$0xf]
      %v719 = vld [vmem:[%s1 + $0x3c] sm:$0xf]
      %v720 = vld [vmem:[#allocation2 + $0x8] sm:$0x1]
      %v721 = vld [vmem:[%s2] sm:$0xf]
      %v722 = vld [vmem:[%s2 + $0x4] sm:$0xf]
      %v723 = vld [vmem:[%s2 + $0x8] sm:$0xf]
      %v724 = vld [vmem:[%s2 + $0xc] sm:$0xf]
      %v725 = vld [vmem:[%s2 + $0x10] sm:$0xf]
      %v726 = vld [vmem:[%s2 + $0x14] sm:$0xf]
      %v727 = vld [vmem:[%s2 + $0x18] sm:$0xf]
      %v728 = vld [vmem:[%s2 + $0x1c] sm:$0xf]
      %v729 = vld [vmem:[%s2 + $0x20] sm:$0xf]
      %v730 = vld [vmem:[%s2 + $0x24] sm:$0xf]
      %v731 = vld [vmem:[%s2 + $0x28] sm:$0xf]
      %v732 = vld [vmem:[%s2 + $0x2c] sm:$0xf]
      %v733 = vld [vmem:[%s2 + $0x30] sm:$0xf]
      %v734 = vld [vmem:[%s2 + $0x34] sm:$0xf]
      %v735 = vld [vmem:[%s2 + $0x38] sm:$0xf]
      %v736 = vld [vmem:[%s2 + $0x3c] sm:$0xf]
      %v740 = vunpack.c.l.b16 %v702
      %v741 = vunpack.c.l.b16 %v703
      %v742 = vunpack.c.l.b16 %v720
      %v743 = vpack.c.b16 %v741, %v740
      %v744 = vpack.c.b16 %v742, %v742
      %vm745 = vsmask.f32 7424
      %v747 = vshrl.u32 %v743, 16
      %v749 = vshll.u32 %v743, 16
      %v751 = vrot.slane %v749, 1
      %v752 = vor.u32 %v747, %v751
      %v754 = vshll.u32 %v744, 16
      %v756 = vrot.slane %v754, 1
      %v757 = vsel %vm745, %v752, %v756
      %v775 = vunpack.c.l.b16 %v721
      %v776 = vunpack.c.l.b16 %v722
      %v777 = vunpack.c.l.b16 %v723
      %v778 = vunpack.c.l.b16 %v724
      %v779 = vunpack.c.l.b16 %v725
      %v780 = vunpack.c.l.b16 %v726
      %v781 = vunpack.c.l.b16 %v727
      %v782 = vunpack.c.l.b16 %v728
      %v783 = vunpack.c.l.b16 %v729
      %v784 = vunpack.c.l.b16 %v730
      %v785 = vunpack.c.l.b16 %v731
      %v786 = vunpack.c.l.b16 %v732
      %v787 = vunpack.c.l.b16 %v733
      %v788 = vunpack.c.l.b16 %v734
      %v789 = vunpack.c.l.b16 %v735
      %v790 = vunpack.c.l.b16 %v736
      %v791 = vpack.c.b16 %v776, %v775
      %v792 = vpack.c.b16 %v778, %v777
      %v793 = vpack.c.b16 %v780, %v779
      %v794 = vpack.c.b16 %v782, %v781
      %v795 = vpack.c.b16 %v784, %v783
      %v796 = vpack.c.b16 %v786, %v785
      %v797 = vpack.c.b16 %v788, %v787
      %v798 = vpack.c.b16 %v790, %v789
      %807 = vmatprep.subr.bf16.mxu0 0
      %808 = vmatpush1.bf16.msra.mxu0 %v791
      %809 = vmatprep.subr.bf16.mxu0 0
      %810 = vmatpush1.bf16.msra.mxu0 %v792
      %811 = vmatprep.subr.bf16.mxu0 0
      %812 = vmatpush1.bf16.msra.mxu0 %v793
      %813 = vmatprep.subr.bf16.mxu0 0
      %814 = vmatpush1.bf16.msra.mxu0 %v794
      %815 = vmatprep.subr.bf16.mxu0 0
      %816 = vmatpush1.bf16.msra.mxu0 %v795
      %817 = vmatprep.subr.bf16.mxu0 0
      %818 = vmatpush1.bf16.msra.mxu0 %v796
      %819 = vmatprep.subr.bf16.mxu0 0
      %820 = vmatpush1.bf16.msra.mxu0 %v797
      %821 = vmatprep.subr.bf16.mxu0 0
      %822 = vmatpush1.bf16.msra.mxu0 %v798
      %823 = vmatprep.subr.bf16.mxu0 0
      %824 = vmatpush1.bf16.msra.mxu0 0
      %825 = vmatprep.subr.bf16.mxu0 0
      %826 = vmatpush1.bf16.msra.mxu0 0
      %827 = vmatprep.subr.bf16.mxu0 0
      %828 = vmatpush1.bf16.msra.mxu0 0
      %829 = vmatprep.subr.bf16.mxu0 0
      %830 = vmatpush1.bf16.msra.mxu0 0
      %831 = vmatprep.subr.bf16.mxu0 0
      %832 = vmatpush1.bf16.msra.mxu0 0
      %833 = vmatprep.subr.bf16.mxu0 0
      %834 = vmatpush1.bf16.msra.mxu0 0
      %835 = vmatprep.subr.bf16.mxu0 0
      %836 = vmatpush1.bf16.msra.mxu0 0
      %837 = vmatprep.subr.bf16.mxu0 0
      %838 = vmatpush1.bf16.msra.mxu0 0
      %839 = vmatprep.mubr.bf16.mxu0 0
      %840 = vmatmul.mubr.bf16.gmra.mrb[0].mxu0 %v757
      %v841 = vpop.f32.mrb[0].mxu0
      %v842 = vadd.f32 0.0, %v841
      %v843 = vpop.f32.mrb[0].mxu0
      %v844 = vpop.f32.mrb[0].mxu0
      %v845 = vadd.f32 0.0, %v844
      %v846 = vpop.f32.mrb[0].mxu0
      %847 = vdwg.mxu0
      %v865 = vunpack.c.l.b16 %v704
      %v866 = vunpack.c.l.b16 %v705
      %v867 = vunpack.c.l.b16 %v706
      %v868 = vunpack.c.l.b16 %v707
      %v869 = vunpack.c.l.b16 %v708
      %v870 = vunpack.c.l.b16 %v709
      %v871 = vunpack.c.l.b16 %v710
      %v872 = vunpack.c.l.b16 %v711
      %v873 = vunpack.c.l.b16 %v712
      %v874 = vunpack.c.l.b16 %v713
      %v875 = vunpack.c.l.b16 %v714
      %v876 = vunpack.c.l.b16 %v715
      %v877 = vunpack.c.l.b16 %v716
      %v878 = vunpack.c.l.b16 %v717
      %v879 = vunpack.c.l.b16 %v718
      %v880 = vunpack.c.l.b16 %v719
      %v881 = vpack.c.b16 %v866, %v865
      %v882 = vpack.c.b16 %v868, %v867
      %v883 = vpack.c.b16 %v870, %v869
      %v884 = vpack.c.b16 %v872, %v871
      %v885 = vpack.c.b16 %v874, %v873
      %v886 = vpack.c.b16 %v876, %v875
      %v887 = vpack.c.b16 %v878, %v877
      %v888 = vpack.c.b16 %v880, %v879
      %897 = vmatprep.subr.bf16.mxu0 0
      %898 = vmatpush1.bf16.msra.mxu0 %v881
      %899 = vmatprep.subr.bf16.mxu0 0
      %900 = vmatpush1.bf16.msra.mxu0 %v882
      %901 = vmatprep.subr.bf16.mxu0 0
      %902 = vmatpush1.bf16.msra.mxu0 %v883
      %903 = vmatprep.subr.bf16.mxu0 0
      %904 = vmatpush1.bf16.msra.mxu0 %v884
      %905 = vmatprep.subr.bf16.mxu0 0
      %906 = vmatpush1.bf16.msra.mxu0 %v885
      %907 = vmatprep.subr.bf16.mxu0 0
      %908 = vmatpush1.bf16.msra.mxu0 %v886
      %909 = vmatprep.subr.bf16.mxu0 0
      %910 = vmatpush1.bf16.msra.mxu0 %v887
      %911 = vmatprep.subr.bf16.mxu0 0
      %912 = vmatpush1.bf16.msra.mxu0 %v888
      %913 = vmatprep.subr.bf16.mxu0 0
      %914 = vmatpush1.bf16.msra.mxu0 0
      %915 = vmatprep.subr.bf16.mxu0 0
      %916 = vmatpush1.bf16.msra.mxu0 0
      %917 = vmatprep.subr.bf16.mxu0 0
      %918 = vmatpush1.bf16.msra.mxu0 0
      %919 = vmatprep.subr.bf16.mxu0 0
      %920 = vmatpush1.bf16.msra.mxu0 0
      %921 = vmatprep.subr.bf16.mxu0 0
      %922 = vmatpush1.bf16.msra.mxu0 0
      %923 = vmatprep.subr.bf16.mxu0 0
      %924 = vmatpush1.bf16.msra.mxu0 0
      %925 = vmatprep.subr.bf16.mxu0 0
      %926 = vmatpush1.bf16.msra.mxu0 0
      %927 = vmatprep.subr.bf16.mxu0 0
      %928 = vmatpush1.bf16.msra.mxu0 0
      %929 = vmatprep.mubr.bf16.mxu0 0
      %930 = vmatmul.mubr.bf16.gmra.mrb[0].mxu0 %v743
      %v931 = vpop.f32.mrb[0].mxu0
      %v932 = vadd.f32 %v842, %v931
      %v933 = vpop.f32.mrb[0].mxu0
      %v934 = vpop.f32.mrb[0].mxu0
      %v935 = vadd.f32 %v845, %v934
      %v936 = vpop.f32.mrb[0].mxu0
      %937 = vdwg.mxu0
      %v938 = vld [vmem:[#allocation2] sm:$0xe]
      %v939 = vld [vmem:[%s3] sm:$0xf]
      %v940 = vld [vmem:[%s3 + $0x4] sm:$0xf]
      %v941 = vld [vmem:[%s3 + $0x8] sm:$0xf]
      %v942 = vld [vmem:[%s3 + $0xc] sm:$0xf]
      %v943 = vld [vmem:[%s3 + $0x10] sm:$0xf]
      %v944 = vld [vmem:[%s3 + $0x14] sm:$0xf]
      %v945 = vld [vmem:[%s3 + $0x18] sm:$0xf]
      %v946 = vld [vmem:[%s3 + $0x1c] sm:$0xf]
      %v947 = vld [vmem:[%s3 + $0x20] sm:$0xf]
      %v948 = vld [vmem:[%s3 + $0x24] sm:$0xf]
      %v949 = vld [vmem:[%s3 + $0x28] sm:$0xf]
      %v950 = vld [vmem:[%s3 + $0x2c] sm:$0xf]
      %v951 = vld [vmem:[%s3 + $0x30] sm:$0xf]
      %v952 = vld [vmem:[%s3 + $0x34] sm:$0xf]
      %v953 = vld [vmem:[%s3 + $0x38] sm:$0xf]
      %v954 = vld [vmem:[%s3 + $0x3c] sm:$0xf]
      %v956 = vunpack.c.l.b16 %v938
      %v957 = vpack.c.b16 %v741, %v956
      %vm958 = vcmask 1046528
      %v959 = vrot.slane %v957, 1
      %v960 = vrot.slane %v744, 1
      %v961 = vsel %vm958, %v959, %v960
      %v979 = vunpack.c.l.b16 %v939
      %v980 = vunpack.c.l.b16 %v940
      %v981 = vunpack.c.l.b16 %v941
      %v982 = vunpack.c.l.b16 %v942
      %v983 = vunpack.c.l.b16 %v943
      %v984 = vunpack.c.l.b16 %v944
      %v985 = vunpack.c.l.b16 %v945
      %v986 = vunpack.c.l.b16 %v946
      %v987 = vunpack.c.l.b16 %v947
      %v988 = vunpack.c.l.b16 %v948
      %v989 = vunpack.c.l.b16 %v949
      %v990 = vunpack.c.l.b16 %v950
      %v991 = vunpack.c.l.b16 %v951
      %v992 = vunpack.c.l.b16 %v952
      %v993 = vunpack.c.l.b16 %v953
      %v994 = vunpack.c.l.b16 %v954
      %v995 = vpack.c.b16 %v980, %v979
      %v996 = vpack.c.b16 %v982, %v981
      %v997 = vpack.c.b16 %v984, %v983
      %v998 = vpack.c.b16 %v986, %v985
      %v999 = vpack.c.b16 %v988, %v987
      %v1000 = vpack.c.b16 %v990, %v989
      %v1001 = vpack.c.b16 %v992, %v991
      %v1002 = vpack.c.b16 %v994, %v993
      %1011 = vmatprep.subr.bf16.mxu0 0
      %1012 = vmatpush1.bf16.msra.mxu0 %v995
      %1013 = vmatprep.subr.bf16.mxu0 0
      %1014 = vmatpush1.bf16.msra.mxu0 %v996
      %1015 = vmatprep.subr.bf16.mxu0 0
      %1016 = vmatpush1.bf16.msra.mxu0 %v997
      %1017 = vmatprep.subr.bf16.mxu0 0
      %1018 = vmatpush1.bf16.msra.mxu0 %v998
      %1019 = vmatprep.subr.bf16.mxu0 0
      %1020 = vmatpush1.bf16.msra.mxu0 %v999
      %1021 = vmatprep.subr.bf16.mxu0 0
      %1022 = vmatpush1.bf16.msra.mxu0 %v1000
      %1023 = vmatprep.subr.bf16.mxu0 0
      %1024 = vmatpush1.bf16.msra.mxu0 %v1001
      %1025 = vmatprep.subr.bf16.mxu0 0
      %1026 = vmatpush1.bf16.msra.mxu0 %v1002
      %1027 = vmatprep.subr.bf16.mxu0 0
      %1028 = vmatpush1.bf16.msra.mxu0 0
      %1029 = vmatprep.subr.bf16.mxu0 0
      %1030 = vmatpush1.bf16.msra.mxu0 0
      %1031 = vmatprep.subr.bf16.mxu0 0
      %1032 = vmatpush1.bf16.msra.mxu0 0
      %1033 = vmatprep.subr.bf16.mxu0 0
      %1034 = vmatpush1.bf16.msra.mxu0 0
      %1035 = vmatprep.subr.bf16.mxu0 0
      %1036 = vmatpush1.bf16.msra.mxu0 0
      %1037 = vmatprep.subr.bf16.mxu0 0
      %1038 = vmatpush1.bf16.msra.mxu0 0
      %1039 = vmatprep.subr.bf16.mxu0 0
      %1040 = vmatpush1.bf16.msra.mxu0 0
      %1041 = vmatprep.subr.bf16.mxu0 0
      %1042 = vmatpush1.bf16.msra.mxu0 0
      %1043 = vmatprep.mubr.bf16.mxu0 0
      %1044 = vmatmul.mubr.bf16.gmra.mrb[0].mxu0 %v961
      %v1045 = vpop.f32.mrb[0].mxu0
      %v1046 = vadd.f32 0.0, %v1045
      %v1047 = vpop.f32.mrb[0].mxu0
      %v1048 = vpop.f32.mrb[0].mxu0
      %v1049 = vadd.f32 0.0, %v1048
      %v1050 = vpop.f32.mrb[0].mxu0
      %1051 = vdwg.mxu0
      %v1052 = vadd.f32 %v932, %v1046
      %v1053 = vadd.f32 %v935, %v1049
      %v1054 = vld [vmem:[%s4] sm:$0x1]
      %v1056 = vlaneseq
      %v1057 = vshrl.u32 %v1056, 7
      %v1058 = vsub.s32 0, %v1057
      %v1059 = vrot.slane %v1054, %v1058
      %v1061 = vmul.f32 %v1052, %v1059
      %v1062 = vmul.f32 %v1053, %v1059
      %v1063 = vld [vmem:[%s5] sm:$0x1]
      %v1065 = vlaneseq
      %v1066 = vshrl.u32 %v1065, 7
      %v1067 = vsub.s32 0, %v1066
      %v1068 = vrot.slane %v1063, %v1067
      %v1070 = vadd.f32 %v1061, %v1068
      %v1071 = vadd.f32 %v1062, %v1068
      %v1072 = vmax.f32 %v1070, 0.0
      %v1073 = vmax.f32 %v1071, 0.0
      %v1074 = vpack.c.bf16 %v1073, %v1072
      %v1076 = vunpack.c.l.b16 %v1074
      %v1077 = vunpack.c.h.b16 %v1074
      %v1078 = vpack.c.b16 %v1076, %v1076
      %v1079 = vpack.c.b16 %v1077, %v1077
      %v1081 = vshrl.u32 %v1078, 16
      %v1083 = vrot.slane %v1081, 7
      %v1084 = vshll.u32 %v1078, 16
      %v1086 = vor.u32 %v1083, %v1084
      %v1087 = vrot.slane %v1083, 4
      %v1089 = vshrl.u32 %v1079, 16
      %v1091 = vrot.slane %v1089, 7
      %v1092 = vshll.u32 %v1079, 16
      %v1094 = vor.u32 %v1091, %v1092
      %v1095 = vsel %vm672, %v1087, %v1094
      %v1096 = vrot.slane %v1091, 4
      %v1100 = vsel %vm694, %v1086, %v702
      %1101 = vst [vmem:[#allocation2] sm:$0xf] %v1100
      %1102 = vst [vmem:[#allocation2 + $0x4] sm:$0xf] %v1095
      %v1103 = vld [vmem:[#allocation2 + $0x8] sm:$0x1]
      %v1104 = vsel %vm660, %v1096, %v1103
      %1105 = vst [vmem:[#allocation2 + $0x8] sm:$0x1] %v1104
      %v1106 = vld [vmem:[#allocation2] sm:$0xf]
      %v1107 = vld [vmem:[#allocation2 + $0x4] sm:$0xf]
      %v1108 = vld [vmem:[%s6] sm:$0xf]
      %v1109 = vld [vmem:[%s6 + $0x4] sm:$0xf]
      %v1110 = vld [vmem:[%s6 + $0x8] sm:$0xf]
      %v1111 = vld [vmem:[%s6 + $0xc] sm:$0xf]
      %v1112 = vld [vmem:[%s6 + $0x10] sm:$0xf]
      %v1113 = vld [vmem:[%s6 + $0x14] sm:$0xf]
      %v1114 = vld [vmem:[%s6 + $0x18] sm:$0xf]
      %v1115 = vld [vmem:[%s6 + $0x1c] sm:$0xf]
      %v1116 = vld [vmem:[%s6 + $0x20] sm:$0xf]
      %v1117 = vld [vmem:[%s6 + $0x24] sm:$0xf]
      %v1118 = vld [vmem:[%s6 + $0x28] sm:$0xf]
      %v1119 = vld [vmem:[%s6 + $0x2c] sm:$0xf]
      %v1120 = vld [vmem:[%s6 + $0x30] sm:$0xf]
      %v1121 = vld [vmem:[%s6 + $0x34] sm:$0xf]
      %v1122 = vld [vmem:[%s6 + $0x38] sm:$0xf]
      %v1123 = vld [vmem:[%s6 + $0x3c] sm:$0xf]
      %v1124 = vld [vmem:[#allocation2 + $0x8] sm:$0x1]
      %v1125 = vld [vmem:[%s7] sm:$0xf]
      %v1126 = vld [vmem:[%s7 + $0x4] sm:$0xf]
      %v1127 = vld [vmem:[%s7 + $0x8] sm:$0xf]
      %v1128 = vld [vmem:[%s7 + $0xc] sm:$0xf]
      %v1129 = vld [vmem:[%s7 + $0x10] sm:$0xf]
      %v1130 = vld [vmem:[%s7 + $0x14] sm:$0xf]
      %v1131 = vld [vmem:[%s7 + $0x18] sm:$0xf]
      %v1132 = vld [vmem:[%s7 + $0x1c] sm:$0xf]
      %v1133 = vld [vmem:[%s7 + $0x20] sm:$0xf]
      %v1134 = vld [vmem:[%s7 + $0x24] sm:$0xf]
      %v1135 = vld [vmem:[%s7 + $0x28] sm:$0xf]
      %v1136 = vld [vmem:[%s7 + $0x2c] sm:$0xf]
      %v1137 = vld [vmem:[%s7 + $0x30] sm:$0xf]
      %v1138 = vld [vmem:[%s7 + $0x34] sm:$0xf]
      %v1139 = vld [vmem:[%s7 + $0x38] sm:$0xf]
      %v1140 = vld [vmem:[%s7 + $0x3c] sm:$0xf]
      %v1144 = vunpack.c.l.b16 %v1106
      %v1145 = vunpack.c.l.b16 %v1107
      %v1146 = vunpack.c.l.b16 %v1124
      %v1147 = vpack.c.b16 %v1145, %v1144
      %v1148 = vpack.c.b16 %v1146, %v1146
      %v1150 = vshrl.u32 %v1147, 16
      %v1152 = vshll.u32 %v1147, 16
      %v1154 = vrot.slane %v1152, 1
      %v1155 = vor.u32 %v1150, %v1154
      %v1157 = vshll.u32 %v1148, 16
      %v1159 = vrot.slane %v1157, 1
      %v1160 = vsel %vm745, %v1155, %v1159
      %v1178 = vunpack.c.l.b16 %v1125
      %v1179 = vunpack.c.l.b16 %v1126
      %v1180 = vunpack.c.l.b16 %v1127
      %v1181 = vunpack.c.l.b16 %v1128
      %v1182 = vunpack.c.l.b16 %v1129
      %v1183 = vunpack.c.l.b16 %v1130
      %v1184 = vunpack.c.l.b16 %v1131
      %v1185 = vunpack.c.l.b16 %v1132
      %v1186 = vunpack.c.l.b16 %v1133
      %v1187 = vunpack.c.l.b16 %v1134
      %v1188 = vunpack.c.l.b16 %v1135
      %v1189 = vunpack.c.l.b16 %v1136
      %v1190 = vunpack.c.l.b16 %v1137
      %v1191 = vunpack.c.l.b16 %v1138
      %v1192 = vunpack.c.l.b16 %v1139
      %v1193 = vunpack.c.l.b16 %v1140
      %v1194 = vpack.c.b16 %v1179, %v1178
      %v1195 = vpack.c.b16 %v1181, %v1180
      %v1196 = vpack.c.b16 %v1183, %v1182
      %v1197 = vpack.c.b16 %v1185, %v1184
      %v1198 = vpack.c.b16 %v1187, %v1186
      %v1199 = vpack.c.b16 %v1189, %v1188
      %v1200 = vpack.c.b16 %v1191, %v1190
      %v1201 = vpack.c.b16 %v1193, %v1192
      %1210 = vmatprep.subr.bf16.mxu0 0
      %1211 = vmatpush1.bf16.msra.mxu0 %v1194
      %1212 = vmatprep.subr.bf16.mxu0 0
      %1213 = vmatpush1.bf16.msra.mxu0 %v1195
      %1214 = vmatprep.subr.bf16.mxu0 0
      %1215 = vmatpush1.bf16.msra.mxu0 %v1196
      %1216 = vmatprep.subr.bf16.mxu0 0
      %1217 = vmatpush1.bf16.msra.mxu0 %v1197
      %1218 = vmatprep.subr.bf16.mxu0 0
      %1219 = vmatpush1.bf16.msra.mxu0 %v1198
      %1220 = vmatprep.subr.bf16.mxu0 0
      %1221 = vmatpush1.bf16.msra.mxu0 %v1199
      %1222 = vmatprep.subr.bf16.mxu0 0
      %1223 = vmatpush1.bf16.msra.mxu0 %v1200
      %1224 = vmatprep.subr.bf16.mxu0 0
      %1225 = vmatpush1.bf16.msra.mxu0 %v1201
      %1226 = vmatprep.subr.bf16.mxu0 0
      %1227 = vmatpush1.bf16.msra.mxu0 0
      %1228 = vmatprep.subr.bf16.mxu0 0
      %1229 = vmatpush1.bf16.msra.mxu0 0
      %1230 = vmatprep.subr.bf16.mxu0 0
      %1231 = vmatpush1.bf16.msra.mxu0 0
      %1232 = vmatprep.subr.bf16.mxu0 0
      %1233 = vmatpush1.bf16.msra.mxu0 0
      %1234 = vmatprep.subr.bf16.mxu0 0
      %1235 = vmatpush1.bf16.msra.mxu0 0
      %1236 = vmatprep.subr.bf16.mxu0 0
      %1237 = vmatpush1.bf16.msra.mxu0 0
      %1238 = vmatprep.subr.bf16.mxu0 0
      %1239 = vmatpush1.bf16.msra.mxu0 0
      %1240 = vmatprep.subr.bf16.mxu0 0
      %1241 = vmatpush1.bf16.msra.mxu0 0
      %1242 = vmatprep.mubr.bf16.mxu0 0
      %1243 = vmatmul.mubr.bf16.gmra.mrb[0].mxu0 %v1160
      %v1244 = vpop.f32.mrb[0].mxu0
      %v1245 = vadd.f32 0.0, %v1244
      %v1246 = vpop.f32.mrb[0].mxu0
      %v1247 = vpop.f32.mrb[0].mxu0
      %v1248 = vadd.f32 0.0, %v1247
      %v1249 = vpop.f32.mrb[0].mxu0
      %1250 = vdwg.mxu0
      %v1268 = vunpack.c.l.b16 %v1108
      %v1269 = vunpack.c.l.b16 %v1109
      %v1270 = vunpack.c.l.b16 %v1110
      %v1271 = vunpack.c.l.b16 %v1111
      %v1272 = vunpack.c.l.b16 %v1112
      %v1273 = vunpack.c.l.b16 %v1113
      %v1274 = vunpack.c.l.b16 %v1114
      %v1275 = vunpack.c.l.b16 %v1115
      %v1276 = vunpack.c.l.b16 %v1116
      %v1277 = vunpack.c.l.b16 %v1117
      %v1278 = vunpack.c.l.b16 %v1118
      %v1279 = vunpack.c.l.b16 %v1119
      %v1280 = vunpack.c.l.b16 %v1120
      %v1281 = vunpack.c.l.b16 %v1121
      %v1282 = vunpack.c.l.b16 %v1122
      %v1283 = vunpack.c.l.b16 %v1123
      %v1284 = vpack.c.b16 %v1269, %v1268
      %v1285 = vpack.c.b16 %v1271, %v1270
      %v1286 = vpack.c.b16 %v1273, %v1272
      %v1287 = vpack.c.b16 %v1275, %v1274
      %v1288 = vpack.c.b16 %v1277, %v1276
      %v1289 = vpack.c.b16 %v1279, %v1278
      %v1290 = vpack.c.b16 %v1281, %v1280
      %v1291 = vpack.c.b16 %v1283, %v1282
      %1300 = vmatprep.subr.bf16.mxu0 0
      %1301 = vmatpush1.bf16.msra.mxu0 %v1284
      %1302 = vmatprep.subr.bf16.mxu0 0
      %1303 = vmatpush1.bf16.msra.mxu0 %v1285
      %1304 = vmatprep.subr.bf16.mxu0 0
      %1305 = vmatpush1.bf16.msra.mxu0 %v1286
      %1306 = vmatprep.subr.bf16.mxu0 0
      %1307 = vmatpush1.bf16.msra.mxu0 %v1287
      %1308 = vmatprep.subr.bf16.mxu0 0
      %1309 = vmatpush1.bf16.msra.mxu0 %v1288
      %1310 = vmatprep.subr.bf16.mxu0 0
      %1311 = vmatpush1.bf16.msra.mxu0 %v1289
      %1312 = vmatprep.subr.bf16.mxu0 0
      %1313 = vmatpush1.bf16.msra.mxu0 %v1290
      %1314 = vmatprep.subr.bf16.mxu0 0
      %1315 = vmatpush1.bf16.msra.mxu0 %v1291
      %1316 = vmatprep.subr.bf16.mxu0 0
      %1317 = vmatpush1.bf16.msra.mxu0 0
      %1318 = vmatprep.subr.bf16.mxu0 0
      %1319 = vmatpush1.bf16.msra.mxu0 0
      %1320 = vmatprep.subr.bf16.mxu0 0
      %1321 = vmatpush1.bf16.msra.mxu0 0
      %1322 = vmatprep.subr.bf16.mxu0 0
      %1323 = vmatpush1.bf16.msra.mxu0 0
      %1324 = vmatprep.subr.bf16.mxu0 0
      %1325 = vmatpush1.bf16.msra.mxu0 0
      %1326 = vmatprep.subr.bf16.mxu0 0
      %1327 = vmatpush1.bf16.msra.mxu0 0
      %1328 = vmatprep.subr.bf16.mxu0 0
      %1329 = vmatpush1.bf16.msra.mxu0 0
      %1330 = vmatprep.subr.bf16.mxu0 0
      %1331 = vmatpush1.bf16.msra.mxu0 0
      %1332 = vmatprep.mubr.bf16.mxu0 0
      %1333 = vmatmul.mubr.bf16.gmra.mrb[0].mxu0 %v1147
      %v1334 = vpop.f32.mrb[0].mxu0
      %v1335 = vadd.f32 %v1245, %v1334
      %v1336 = vpop.f32.mrb[0].mxu0
      %v1337 = vpop.f32.mrb[0].mxu0
      %v1338 = vadd.f32 %v1248, %v1337
      %v1339 = vpop.f32.mrb[0].mxu0
      %1340 = vdwg.mxu0
      %v1341 = vld [vmem:[#allocation2] sm:$0xe]
      %v1342 = vld [vmem:[%s8] sm:$0xf]
      %v1343 = vld [vmem:[%s8 + $0x4] sm:$0xf]
      %v1344 = vld [vmem:[%s8 + $0x8] sm:$0xf]
      %v1345 = vld [vmem:[%s8 + $0xc] sm:$0xf]
      %v1346 = vld [vmem:[%s8 + $0x10] sm:$0xf]
      %v1347 = vld [vmem:[%s8 + $0x14] sm:$0xf]
      %v1348 = vld [vmem:[%s8 + $0x18] sm:$0xf]
      %v1349 = vld [vmem:[%s8 + $0x1c] sm:$0xf]
      %v1350 = vld [vmem:[%s8 + $0x20] sm:$0xf]
      %v1351 = vld [vmem:[%s8 + $0x24] sm:$0xf]
      %v1352 = vld [vmem:[%s8 + $0x28] sm:$0xf]
      %v1353 = vld [vmem:[%s8 + $0x2c] sm:$0xf]
      %v1354 = vld [vmem:[%s8 + $0x30] sm:$0xf]
      %v1355 = vld [vmem:[%s8 + $0x34] sm:$0xf]
      %v1356 = vld [vmem:[%s8 + $0x38] sm:$0xf]
      %v1357 = vld [vmem:[%s8 + $0x3c] sm:$0xf]
      %v1359 = vunpack.c.l.b16 %v1341
      %v1360 = vpack.c.b16 %v1145, %v1359
      %v1361 = vrot.slane %v1360, 1
      %v1362 = vrot.slane %v1148, 1
      %v1363 = vsel %vm958, %v1361, %v1362
      %v1381 = vunpack.c.l.b16 %v1342
      %v1382 = vunpack.c.l.b16 %v1343
      %v1383 = vunpack.c.l.b16 %v1344
      %v1384 = vunpack.c.l.b16 %v1345
      %v1385 = vunpack.c.l.b16 %v1346
      %v1386 = vunpack.c.l.b16 %v1347
      %v1387 = vunpack.c.l.b16 %v1348
      %v1388 = vunpack.c.l.b16 %v1349
      %v1389 = vunpack.c.l.b16 %v1350
      %v1390 = vunpack.c.l.b16 %v1351
      %v1391 = vunpack.c.l.b16 %v1352
      %v1392 = vunpack.c.l.b16 %v1353
      %v1393 = vunpack.c.l.b16 %v1354
      %v1394 = vunpack.c.l.b16 %v1355
      %v1395 = vunpack.c.l.b16 %v1356
      %v1396 = vunpack.c.l.b16 %v1357
      %v1397 = vpack.c.b16 %v1382, %v1381
      %v1398 = vpack.c.b16 %v1384, %v1383
      %v1399 = vpack.c.b16 %v1386, %v1385
      %v1400 = vpack.c.b16 %v1388, %v1387
      %v1401 = vpack.c.b16 %v1390, %v1389
      %v1402 = vpack.c.b16 %v1392, %v1391
      %v1403 = vpack.c.b16 %v1394, %v1393
      %v1404 = vpack.c.b16 %v1396, %v1395
      %1413 = vmatprep.subr.bf16.mxu0 0
      %1414 = vmatpush1.bf16.msra.mxu0 %v1397
      %1415 = vmatprep.subr.bf16.mxu0 0
      %1416 = vmatpush1.bf16.msra.mxu0 %v1398
      %1417 = vmatprep.subr.bf16.mxu0 0
      %1418 = vmatpush1.bf16.msra.mxu0 %v1399
      %1419 = vmatprep.subr.bf16.mxu0 0
      %1420 = vmatpush1.bf16.msra.mxu0 %v1400
      %1421 = vmatprep.subr.bf16.mxu0 0
      %1422 = vmatpush1.bf16.msra.mxu0 %v1401
      %1423 = vmatprep.subr.bf16.mxu0 0
      %1424 = vmatpush1.bf16.msra.mxu0 %v1402
      %1425 = vmatprep.subr.bf16.mxu0 0
      %1426 = vmatpush1.bf16.msra.mxu0 %v1403
      %1427 = vmatprep.subr.bf16.mxu0 0
      %1428 = vmatpush1.bf16.msra.mxu0 %v1404
      %1429 = vmatprep.subr.bf16.mxu0 0
      %1430 = vmatpush1.bf16.msra.mxu0 0
      %1431 = vmatprep.subr.bf16.mxu0 0
      %1432 = vmatpush1.bf16.msra.mxu0 0
      %1433 = vmatprep.subr.bf16.mxu0 0
      %1434 = vmatpush1.bf16.msra.mxu0 0
      %1435 = vmatprep.subr.bf16.mxu0 0
      %1436 = vmatpush1.bf16.msra.mxu0 0
      %1437 = vmatprep.subr.bf16.mxu0 0
      %1438 = vmatpush1.bf16.msra.mxu0 0
      %1439 = vmatprep.subr.bf16.mxu0 0
      %1440 = vmatpush1.bf16.msra.mxu0 0
      %1441 = vmatprep.subr.bf16.mxu0 0
      %1442 = vmatpush1.bf16.msra.mxu0 0
      %1443 = vmatprep.subr.bf16.mxu0 0
      %1444 = vmatpush1.bf16.msra.mxu0 0
      %1445 = vmatprep.mubr.bf16.mxu0 0
      %1446 = vmatmul.mubr.bf16.gmra.mrb[0].mxu0 %v1363
      %v1447 = vpop.f32.mrb[0].mxu0
      %v1448 = vadd.f32 0.0, %v1447
      %v1449 = vpop.f32.mrb[0].mxu0
      %v1450 = vpop.f32.mrb[0].mxu0
      %v1451 = vadd.f32 0.0, %v1450
      %v1452 = vpop.f32.mrb[0].mxu0
      %1453 = vdwg.mxu0
      %v1454 = vadd.f32 %v1335, %v1448
      %v1455 = vadd.f32 %v1338, %v1451
      %v1456 = vld [vmem:[%s9] sm:$0x1]
      %v1458 = vlaneseq
      %v1459 = vshrl.u32 %v1458, 7
      %v1460 = vsub.s32 0, %v1459
      %v1461 = vrot.slane %v1456, %v1460
      %v1463 = vmul.f32 %v1454, %v1461
      %v1464 = vmul.f32 %v1455, %v1461
      %v1465 = vld [vmem:[%s10] sm:$0x1]
      %v1467 = vlaneseq
      %v1468 = vshrl.u32 %v1467, 7
      %v1469 = vsub.s32 0, %v1468
      %v1470 = vrot.slane %v1465, %v1469
      %v1472 = vadd.f32 %v1463, %v1470
      %v1473 = vadd.f32 %v1464, %v1470
      %v1474 = vmax.f32 %v1472, 0.0
      %v1475 = vmax.f32 %v1473, 0.0
      %v1476 = vpack.c.bf16 %v1475, %v1474
      %v1478 = vunpack.c.l.b16 %v1476
      %v1479 = vunpack.c.h.b16 %v1476
      %v1480 = vpack.c.b16 %v1478, %v1478
      %v1481 = vpack.c.b16 %v1479, %v1479
      %v1483 = vshrl.u32 %v1480, 16
      %v1485 = vrot.slane %v1483, 7
      %v1486 = vshll.u32 %v1480, 16
      %v1488 = vor.u32 %v1485, %v1486
      %v1489 = vrot.slane %v1485, 4
      %v1491 = vshrl.u32 %v1481, 16
      %v1493 = vrot.slane %v1491, 7
      %v1494 = vshll.u32 %v1481, 16
      %v1496 = vor.u32 %v1493, %v1494
      %v1497 = vsel %vm672, %v1489, %v1496
      %v1498 = vrot.slane %v1493, 4
      %v1502 = vsel %vm694, %v1488, %v1106
      %1503 = vst [vmem:[#allocation2] sm:$0xf] %v1502
      %1504 = vst [vmem:[#allocation2 + $0x4] sm:$0xf] %v1497
      %v1505 = vld [vmem:[#allocation2 + $0x8] sm:$0x1]
      %v1506 = vsel %vm660, %v1498, %v1505
      %1507 = vst [vmem:[#allocation2 + $0x8] sm:$0x1] %v1506
      %v1508 = vld [vmem:[#allocation2] sm:$0xf]
      %v1509 = vld [vmem:[#allocation2 + $0x4] sm:$0xf]
      %v1510 = vld [vmem:[%s11] sm:$0xf]
      %v1511 = vld [vmem:[%s11 + $0x4] sm:$0xf]
      %v1512 = vld [vmem:[%s11 + $0x8] sm:$0xf]
      %v1513 = vld [vmem:[%s11 + $0xc] sm:$0xf]
      %v1514 = vld [vmem:[%s11 + $0x10] sm:$0xf]
      %v1515 = vld [vmem:[%s11 + $0x14] sm:$0xf]
      %v1516 = vld [vmem:[%s11 + $0x18] sm:$0xf]
      %v1517 = vld [vmem:[%s11 + $0x1c] sm:$0xf]
      %v1518 = vld [vmem:[%s11 + $0x20] sm:$0xf]
      %v1519 = vld [vmem:[%s11 + $0x24] sm:$0xf]
      %v1520 = vld [vmem:[%s11 + $0x28] sm:$0xf]
      %v1521 = vld [vmem:[%s11 + $0x2c] sm:$0xf]
      %v1522 = vld [vmem:[%s11 + $0x30] sm:$0xf]
      %v1523 = vld [vmem:[%s11 + $0x34] sm:$0xf]
      %v1524 = vld [vmem:[%s11 + $0x38] sm:$0xf]
      %v1525 = vld [vmem:[%s11 + $0x3c] sm:$0xf]
      %v1526 = vld [vmem:[#allocation2 + $0x8] sm:$0x1]
      %v1527 = vld [vmem:[%s12] sm:$0xf]
      %v1528 = vld [vmem:[%s12 + $0x4] sm:$0xf]
      %v1529 = vld [vmem:[%s12 + $0x8] sm:$0xf]
      %v1530 = vld [vmem:[%s12 + $0xc] sm:$0xf]
      %v1531 = vld [vmem:[%s12 + $0x10] sm:$0xf]
      %v1532 = vld [vmem:[%s12 + $0x14] sm:$0xf]
      %v1533 = vld [vmem:[%s12 + $0x18] sm:$0xf]
      %v1534 = vld [vmem:[%s12 + $0x1c] sm:$0xf]
      %v1535 = vld [vmem:[%s12 + $0x20] sm:$0xf]
      %v1536 = vld [vmem:[%s12 + $0x24] sm:$0xf]
      %v1537 = vld [vmem:[%s12 + $0x28] sm:$0xf]
      %v1538 = vld [vmem:[%s12 + $0x2c] sm:$0xf]
      %v1539 = vld [vmem:[%s12 + $0x30] sm:$0xf]
      %v1540 = vld [vmem:[%s12 + $0x34] sm:$0xf]
      %v1541 = vld [vmem:[%s12 + $0x38] sm:$0xf]
      %v1542 = vld [vmem:[%s12 + $0x3c] sm:$0xf]
      %v1546 = vunpack.c.l.b16 %v1508
      %v1547 = vunpack.c.l.b16 %v1509
      %v1548 = vunpack.c.l.b16 %v1526
      %v1549 = vpack.c.b16 %v1547, %v1546
      %v1550 = vpack.c.b16 %v1548, %v1548
      %v1552 = vshrl.u32 %v1549, 16
      %v1554 = vshll.u32 %v1549, 16
      %v1556 = vrot.slane %v1554, 1
      %v1557 = vor.u32 %v1552, %v1556
      %v1559 = vshll.u32 %v1550, 16
      %v1561 = vrot.slane %v1559, 1
      %v1562 = vsel %vm745, %v1557, %v1561
      %v1580 = vunpack.c.l.b16 %v1527
      %v1581 = vunpack.c.l.b16 %v1528
      %v1582 = vunpack.c.l.b16 %v1529
      %v1583 = vunpack.c.l.b16 %v1530
      %v1584 = vunpack.c.l.b16 %v1531
      %v1585 = vunpack.c.l.b16 %v1532
      %v1586 = vunpack.c.l.b16 %v1533
      %v1587 = vunpack.c.l.b16 %v1534
      %v1588 = vunpack.c.l.b16 %v1535
      %v1589 = vunpack.c.l.b16 %v1536
      %v1590 = vunpack.c.l.b16 %v1537
      %v1591 = vunpack.c.l.b16 %v1538
      %v1592 = vunpack.c.l.b16 %v1539
      %v1593 = vunpack.c.l.b16 %v1540
      %v1594 = vunpack.c.l.b16 %v1541
      %v1595 = vunpack.c.l.b16 %v1542
      %v1596 = vpack.c.b16 %v1581, %v1580
      %v1597 = vpack.c.b16 %v1583, %v1582
      %v1598 = vpack.c.b16 %v1585, %v1584
      %v1599 = vpack.c.b16 %v1587, %v1586
      %v1600 = vpack.c.b16 %v1589, %v1588
      %v1601 = vpack.c.b16 %v1591, %v1590
      %v1602 = vpack.c.b16 %v1593, %v1592
      %v1603 = vpack.c.b16 %v1595, %v1594
      %1612 = vmatprep.subr.bf16.mxu0 0
      %1613 = vmatpush1.bf16.msra.mxu0 %v1596
      %1614 = vmatprep.subr.bf16.mxu0 0
      %1615 = vmatpush1.bf16.msra.mxu0 %v1597
      %1616 = vmatprep.subr.bf16.mxu0 0
      %1617 = vmatpush1.bf16.msra.mxu0 %v1598
      %1618 = vmatprep.subr.bf16.mxu0 0
      %1619 = vmatpush1.bf16.msra.mxu0 %v1599
      %1620 = vmatprep.subr.bf16.mxu0 0
      %1621 = vmatpush1.bf16.msra.mxu0 %v1600
      %1622 = vmatprep.subr.bf16.mxu0 0
      %1623 = vmatpush1.bf16.msra.mxu0 %v1601
      %1624 = vmatprep.subr.bf16.mxu0 0
      %1625 = vmatpush1.bf16.msra.mxu0 %v1602
      %1626 = vmatprep.subr.bf16.mxu0 0
      %1627 = vmatpush1.bf16.msra.mxu0 %v1603
      %1628 = vmatprep.subr.bf16.mxu0 0
      %1629 = vmatpush1.bf16.msra.mxu0 0
      %1630 = vmatprep.subr.bf16.mxu0 0
      %1631 = vmatpush1.bf16.msra.mxu0 0
      %1632 = vmatprep.subr.bf16.mxu0 0
      %1633 = vmatpush1.bf16.msra.mxu0 0
      %1634 = vmatprep.subr.bf16.mxu0 0
      %1635 = vmatpush1.bf16.msra.mxu0 0
      %1636 = vmatprep.subr.bf16.mxu0 0
      %1637 = vmatpush1.bf16.msra.mxu0 0
      %1638 = vmatprep.subr.bf16.mxu0 0
      %1639 = vmatpush1.bf16.msra.mxu0 0
      %1640 = vmatprep.subr.bf16.mxu0 0
      %1641 = vmatpush1.bf16.msra.mxu0 0
      %1642 = vmatprep.subr.bf16.mxu0 0
      %1643 = vmatpush1.bf16.msra.mxu0 0
      %1644 = vmatprep.mubr.bf16.mxu0 0
      %1645 = vmatmul.mubr.bf16.gmra.mrb[0].mxu0 %v1562
      %v1646 = vpop.f32.mrb[0].mxu0
      %v1647 = vadd.f32 0.0, %v1646
      %v1648 = vpop.f32.mrb[0].mxu0
      %v1649 = vpop.f32.mrb[0].mxu0
      %v1650 = vadd.f32 0.0, %v1649
      %v1651 = vpop.f32.mrb[0].mxu0
      %1652 = vdwg.mxu0
      %v1670 = vunpack.c.l.b16 %v1510
      %v1671 = vunpack.c.l.b16 %v1511
      %v1672 = vunpack.c.l.b16 %v1512
      %v1673 = vunpack.c.l.b16 %v1513
      %v1674 = vunpack.c.l.b16 %v1514
      %v1675 = vunpack.c.l.b16 %v1515
      %v1676 = vunpack.c.l.b16 %v1516
      %v1677 = vunpack.c.l.b16 %v1517
      %v1678 = vunpack.c.l.b16 %v1518
      %v1679 = vunpack.c.l.b16 %v1519
      %v1680 = vunpack.c.l.b16 %v1520
      %v1681 = vunpack.c.l.b16 %v1521
      %v1682 = vunpack.c.l.b16 %v1522
      %v1683 = vunpack.c.l.b16 %v1523
      %v1684 = vunpack.c.l.b16 %v1524
      %v1685 = vunpack.c.l.b16 %v1525
      %v1686 = vpack.c.b16 %v1671, %v1670
      %v1687 = vpack.c.b16 %v1673, %v1672
      %v1688 = vpack.c.b16 %v1675, %v1674
      %v1689 = vpack.c.b16 %v1677, %v1676
      %v1690 = vpack.c.b16 %v1679, %v1678
      %v1691 = vpack.c.b16 %v1681, %v1680
      %v1692 = vpack.c.b16 %v1683, %v1682
      %v1693 = vpack.c.b16 %v1685, %v1684
      %1702 = vmatprep.subr.bf16.mxu0 0
      %1703 = vmatpush1.bf16.msra.mxu0 %v1686
      %1704 = vmatprep.subr.bf16.mxu0 0
      %1705 = vmatpush1.bf16.msra.mxu0 %v1687
      %1706 = vmatprep.subr.bf16.mxu0 0
      %1707 = vmatpush1.bf16.msra.mxu0 %v1688
      %1708 = vmatprep.subr.bf16.mxu0 0
      %1709 = vmatpush1.bf16.msra.mxu0 %v1689
      %1710 = vmatprep.subr.bf16.mxu0 0
      %1711 = vmatpush1.bf16.msra.mxu0 %v1690
      %1712 = vmatprep.subr.bf16.mxu0 0
      %1713 = vmatpush1.bf16.msra.mxu0 %v1691
      %1714 = vmatprep.subr.bf16.mxu0 0
      %1715 = vmatpush1.bf16.msra.mxu0 %v1692
      %1716 = vmatprep.subr.bf16.mxu0 0
      %1717 = vmatpush1.bf16.msra.mxu0 %v1693
      %1718 = vmatprep.subr.bf16.mxu0 0
      %1719 = vmatpush1.bf16.msra.mxu0 0
      %1720 = vmatprep.subr.bf16.mxu0 0
      %1721 = vmatpush1.bf16.msra.mxu0 0
      %1722 = vmatprep.subr.bf16.mxu0 0
      %1723 = vmatpush1.bf16.msra.mxu0 0
      %1724 = vmatprep.subr.bf16.mxu0 0
      %1725 = vmatpush1.bf16.msra.mxu0 0
      %1726 = vmatprep.subr.bf16.mxu0 0
      %1727 = vmatpush1.bf16.msra.mxu0 0
      %1728 = vmatprep.subr.bf16.mxu0 0
      %1729 = vmatpush1.bf16.msra.mxu0 0
      %1730 = vmatprep.subr.bf16.mxu0 0
      %1731 = vmatpush1.bf16.msra.mxu0 0
      %1732 = vmatprep.subr.bf16.mxu0 0
      %1733 = vmatpush1.bf16.msra.mxu0 0
      %1734 = vmatprep.mubr.bf16.mxu0 0
      %1735 = vmatmul.mubr.bf16.gmra.mrb[0].mxu0 %v1549
      %v1736 = vpop.f32.mrb[0].mxu0
      %v1737 = vadd.f32 %v1647, %v1736
      %v1738 = vpop.f32.mrb[0].mxu0
      %v1739 = vpop.f32.mrb[0].mxu0
      %v1740 = vadd.f32 %v1650, %v1739
      %v1741 = vpop.f32.mrb[0].mxu0
      %1742 = vdwg.mxu0
      %v1743 = vld [vmem:[#allocation2] sm:$0xe]
      %v1744 = vld [vmem:[%s13] sm:$0xf]
      %v1745 = vld [vmem:[%s13 + $0x4] sm:$0xf]
      %v1746 = vld [vmem:[%s13 + $0x8] sm:$0xf]
      %v1747 = vld [vmem:[%s13 + $0xc] sm:$0xf]
      %v1748 = vld [vmem:[%s13 + $0x10] sm:$0xf]
      %v1749 = vld [vmem:[%s13 + $0x14] sm:$0xf]
      %v1750 = vld [vmem:[%s13 + $0x18] sm:$0xf]
      %v1751 = vld [vmem:[%s13 + $0x1c] sm:$0xf]
      %v1752 = vld [vmem:[%s13 + $0x20] sm:$0xf]
      %v1753 = vld [vmem:[%s13 + $0x24] sm:$0xf]
      %v1754 = vld [vmem:[%s13 + $0x28] sm:$0xf]
      %v1755 = vld [vmem:[%s13 + $0x2c] sm:$0xf]
      %v1756 = vld [vmem:[%s13 + $0x30] sm:$0xf]
      %v1757 = vld [vmem:[%s13 + $0x34] sm:$0xf]
      %v1758 = vld [vmem:[%s13 + $0x38] sm:$0xf]
      %v1759 = vld [vmem:[%s13 + $0x3c] sm:$0xf]
      %v1761 = vunpack.c.l.b16 %v1743
      %v1762 = vpack.c.b16 %v1547, %v1761
      %v1763 = vrot.slane %v1762, 1
      %v1764 = vrot.slane %v1550, 1
      %v1765 = vsel %vm958, %v1763, %v1764
      %v1783 = vunpack.c.l.b16 %v1744
      %v1784 = vunpack.c.l.b16 %v1745
      %v1785 = vunpack.c.l.b16 %v1746
      %v1786 = vunpack.c.l.b16 %v1747
      %v1787 = vunpack.c.l.b16 %v1748
      %v1788 = vunpack.c.l.b16 %v1749
      %v1789 = vunpack.c.l.b16 %v1750
      %v1790 = vunpack.c.l.b16 %v1751
      %v1791 = vunpack.c.l.b16 %v1752
      %v1792 = vunpack.c.l.b16 %v1753
      %v1793 = vunpack.c.l.b16 %v1754
      %v1794 = vunpack.c.l.b16 %v1755
      %v1795 = vunpack.c.l.b16 %v1756
      %v1796 = vunpack.c.l.b16 %v1757
      %v1797 = vunpack.c.l.b16 %v1758
      %v1798 = vunpack.c.l.b16 %v1759
      %v1799 = vpack.c.b16 %v1784, %v1783
      %v1800 = vpack.c.b16 %v1786, %v1785
      %v1801 = vpack.c.b16 %v1788, %v1787
      %v1802 = vpack.c.b16 %v1790, %v1789
      %v1803 = vpack.c.b16 %v1792, %v1791
      %v1804 = vpack.c.b16 %v1794, %v1793
      %v1805 = vpack.c.b16 %v1796, %v1795
      %v1806 = vpack.c.b16 %v1798, %v1797
      %1815 = vmatprep.subr.bf16.mxu0 0
      %1816 = vmatpush1.bf16.msra.mxu0 %v1799
      %1817 = vmatprep.subr.bf16.mxu0 0
      %1818 = vmatpush1.bf16.msra.mxu0 %v1800
      %1819 = vmatprep.subr.bf16.mxu0 0
      %1820 = vmatpush1.bf16.msra.mxu0 %v1801
      %1821 = vmatprep.subr.bf16.mxu0 0
      %1822 = vmatpush1.bf16.msra.mxu0 %v1802
      %1823 = vmatprep.subr.bf16.mxu0 0
      %1824 = vmatpush1.bf16.msra.mxu0 %v1803
      %1825 = vmatprep.subr.bf16.mxu0 0
      %1826 = vmatpush1.bf16.msra.mxu0 %v1804
      %1827 = vmatprep.subr.bf16.mxu0 0
      %1828 = vmatpush1.bf16.msra.mxu0 %v1805
      %1829 = vmatprep.subr.bf16.mxu0 0
      %1830 = vmatpush1.bf16.msra.mxu0 %v1806
      %1831 = vmatprep.subr.bf16.mxu0 0
      %1832 = vmatpush1.bf16.msra.mxu0 0
      %1833 = vmatprep.subr.bf16.mxu0 0
      %1834 = vmatpush1.bf16.msra.mxu0 0
      %1835 = vmatprep.subr.bf16.mxu0 0
      %1836 = vmatpush1.bf16.msra.mxu0 0
      %1837 = vmatprep.subr.bf16.mxu0 0
      %1838 = vmatpush1.bf16.msra.mxu0 0
      %1839 = vmatprep.subr.bf16.mxu0 0
      %1840 = vmatpush1.bf16.msra.mxu0 0
      %1841 = vmatprep.subr.bf16.mxu0 0
      %1842 = vmatpush1.bf16.msra.mxu0 0
      %1843 = vmatprep.subr.bf16.mxu0 0
      %1844 = vmatpush1.bf16.msra.mxu0 0
      %1845 = vmatprep.subr.bf16.mxu0 0
      %1846 = vmatpush1.bf16.msra.mxu0 0
      %1847 = vmatprep.mubr.bf16.mxu0 0
      %1848 = vmatmul.mubr.bf16.gmra.mrb[0].mxu0 %v1765
      %v1849 = vpop.f32.mrb[0].mxu0
      %v1850 = vadd.f32 0.0, %v1849
      %v1851 = vpop.f32.mrb[0].mxu0
      %v1852 = vpop.f32.mrb[0].mxu0
      %v1853 = vadd.f32 0.0, %v1852
      %v1854 = vpop.f32.mrb[0].mxu0
      %1855 = vdwg.mxu0
      %v1856 = vadd.f32 %v1737, %v1850
      %v1857 = vadd.f32 %v1740, %v1853
      %v1858 = vld [vmem:[%s14] sm:$0x1]
      %v1860 = vlaneseq
      %v1861 = vshrl.u32 %v1860, 7
      %v1862 = vsub.s32 0, %v1861
      %v1863 = vrot.slane %v1858, %v1862
      %v1865 = vmul.f32 %v1856, %v1863
      %v1866 = vmul.f32 %v1857, %v1863
      %v1867 = vld [vmem:[%s15] sm:$0x1]
      %v1869 = vlaneseq
      %v1870 = vshrl.u32 %v1869, 7
      %v1871 = vsub.s32 0, %v1870
      %v1872 = vrot.slane %v1867, %v1871
      %v1874 = vadd.f32 %v1865, %v1872
      %v1875 = vadd.f32 %v1866, %v1872
      %v1876 = vmax.f32 %v1874, 0.0
      %v1877 = vmax.f32 %v1875, 0.0
      %v1878 = vpack.c.bf16 %v1877, %v1876
      %v1880 = vunpack.c.l.b16 %v1878
      %v1881 = vunpack.c.h.b16 %v1878
      %v1882 = vpack.c.b16 %v1880, %v1880
      %v1883 = vpack.c.b16 %v1881, %v1881
      %v1885 = vshrl.u32 %v1882, 16
      %v1887 = vrot.slane %v1885, 7
      %v1888 = vshll.u32 %v1882, 16
      %v1890 = vor.u32 %v1887, %v1888
      %v1891 = vrot.slane %v1887, 4
      %v1893 = vshrl.u32 %v1883, 16
      %v1895 = vrot.slane %v1893, 7
      %v1896 = vshll.u32 %v1883, 16
      %v1898 = vor.u32 %v1895, %v1896
      %v1899 = vsel %vm672, %v1891, %v1898
      %v1900 = vrot.slane %v1895, 4
      %v1904 = vsel %vm694, %v1890, %v1508
      %1905 = vst [vmem:[#allocation2] sm:$0xf] %v1904
      %1906 = vst [vmem:[#allocation2 + $0x4] sm:$0xf] %v1899
      %v1907 = vld [vmem:[#allocation2 + $0x8] sm:$0x1]
      %v1908 = vsel %vm660, %v1900, %v1907
      %1909 = vst [vmem:[#allocation2 + $0x8] sm:$0x1] %v1908
      %v1910 = vld [vmem:[#allocation2] sm:$0xf]
      %v1911 = vld [vmem:[#allocation2 + $0x4] sm:$0xf]
      %v1912 = vld [vmem:[%s16] sm:$0xf]
      %v1913 = vld [vmem:[%s16 + $0x4] sm:$0xf]
      %v1914 = vld [vmem:[%s16 + $0x8] sm:$0xf]
      %v1915 = vld [vmem:[%s16 + $0xc] sm:$0xf]
      %v1916 = vld [vmem:[%s16 + $0x10] sm:$0xf]
      %v1917 = vld [vmem:[%s16 + $0x14] sm:$0xf]
      %v1918 = vld [vmem:[%s16 + $0x18] sm:$0xf]
      %v1919 = vld [vmem:[%s16 + $0x1c] sm:$0xf]
      %v1920 = vld [vmem:[%s16 + $0x20] sm:$0xf]
      %v1921 = vld [vmem:[%s16 + $0x24] sm:$0xf]
      %v1922 = vld [vmem:[%s16 + $0x28] sm:$0xf]
      %v1923 = vld [vmem:[%s16 + $0x2c] sm:$0xf]
      %v1924 = vld [vmem:[%s16 + $0x30] sm:$0xf]
      %v1925 = vld [vmem:[%s16 + $0x34] sm:$0xf]
      %v1926 = vld [vmem:[%s16 + $0x38] sm:$0xf]
      %v1927 = vld [vmem:[%s16 + $0x3c] sm:$0xf]
      %v1928 = vld [vmem:[#allocation2 + $0x8] sm:$0x1]
      %v1929 = vld [vmem:[%s17] sm:$0xf]
      %v1930 = vld [vmem:[%s17 + $0x4] sm:$0xf]
      %v1931 = vld [vmem:[%s17 + $0x8] sm:$0xf]
      %v1932 = vld [vmem:[%s17 + $0xc] sm:$0xf]
      %v1933 = vld [vmem:[%s17 + $0x10] sm:$0xf]
      %v1934 = vld [vmem:[%s17 + $0x14] sm:$0xf]
      %v1935 = vld [vmem:[%s17 + $0x18] sm:$0xf]
      %v1936 = vld [vmem:[%s17 + $0x1c] sm:$0xf]
      %v1937 = vld [vmem:[%s17 + $0x20] sm:$0xf]
      %v1938 = vld [vmem:[%s17 + $0x24] sm:$0xf]
      %v1939 = vld [vmem:[%s17 + $0x28] sm:$0xf]
      %v1940 = vld [vmem:[%s17 + $0x2c] sm:$0xf]
      %v1941 = vld [vmem:[%s17 + $0x30] sm:$0xf]
      %v1942 = vld [vmem:[%s17 + $0x34] sm:$0xf]
      %v1943 = vld [vmem:[%s17 + $0x38] sm:$0xf]
      %v1944 = vld [vmem:[%s17 + $0x3c] sm:$0xf]
      %v1948 = vunpack.c.l.b16 %v1910
      %v1949 = vunpack.c.l.b16 %v1911
      %v1950 = vunpack.c.l.b16 %v1928
      %v1951 = vpack.c.b16 %v1949, %v1948
      %v1952 = vpack.c.b16 %v1950, %v1950
      %v1954 = vshrl.u32 %v1951, 16
      %v1956 = vshll.u32 %v1951, 16
      %v1958 = vrot.slane %v1956, 1
      %v1959 = vor.u32 %v1954, %v1958
      %v1961 = vshll.u32 %v1952, 16
      %v1963 = vrot.slane %v1961, 1
      %v1964 = vsel %vm745, %v1959, %v1963
      %v1982 = vunpack.c.l.b16 %v1929
      %v1983 = vunpack.c.l.b16 %v1930
      %v1984 = vunpack.c.l.b16 %v1931
      %v1985 = vunpack.c.l.b16 %v1932
      %v1986 = vunpack.c.l.b16 %v1933
      %v1987 = vunpack.c.l.b16 %v1934
      %v1988 = vunpack.c.l.b16 %v1935
      %v1989 = vunpack.c.l.b16 %v1936
      %v1990 = vunpack.c.l.b16 %v1937
      %v1991 = vunpack.c.l.b16 %v1938
      %v1992 = vunpack.c.l.b16 %v1939
      %v1993 = vunpack.c.l.b16 %v1940
      %v1994 = vunpack.c.l.b16 %v1941
      %v1995 = vunpack.c.l.b16 %v1942
      %v1996 = vunpack.c.l.b16 %v1943
      %v1997 = vunpack.c.l.b16 %v1944
      %v1998 = vpack.c.b16 %v1983, %v1982
      %v1999 = vpack.c.b16 %v1985, %v1984
      %v2000 = vpack.c.b16 %v1987, %v1986
      %v2001 = vpack.c.b16 %v1989, %v1988
      %v2002 = vpack.c.b16 %v1991, %v1990
      %v2003 = vpack.c.b16 %v1993, %v1992
      %v2004 = vpack.c.b16 %v1995, %v1994
      %v2005 = vpack.c.b16 %v1997, %v1996
      %2014 = vmatprep.subr.bf16.mxu0 0
      %2015 = vmatpush1.bf16.msra.mxu0 %v1998
      %2016 = vmatprep.subr.bf16.mxu0 0
      %2017 = vmatpush1.bf16.msra.mxu0 %v1999
      %2018 = vmatprep.subr.bf16.mxu0 0
      %2019 = vmatpush1.bf16.msra.mxu0 %v2000
      %2020 = vmatprep.subr.bf16.mxu0 0
      %2021 = vmatpush1.bf16.msra.mxu0 %v2001
      %2022 = vmatprep.subr.bf16.mxu0 0
      %2023 = vmatpush1.bf16.msra.mxu0 %v2002
      %2024 = vmatprep.subr.bf16.mxu0 0
      %2025 = vmatpush1.bf16.msra.mxu0 %v2003
      %2026 = vmatprep.subr.bf16.mxu0 0
      %2027 = vmatpush1.bf16.msra.mxu0 %v2004
      %2028 = vmatprep.subr.bf16.mxu0 0
      %2029 = vmatpush1.bf16.msra.mxu0 %v2005
      %2030 = vmatprep.subr.bf16.mxu0 0
      %2031 = vmatpush1.bf16.msra.mxu0 0
      %2032 = vmatprep.subr.bf16.mxu0 0
      %2033 = vmatpush1.bf16.msra.mxu0 0
      %2034 = vmatprep.subr.bf16.mxu0 0
      %2035 = vmatpush1.bf16.msra.mxu0 0
      %2036 = vmatprep.subr.bf16.mxu0 0
      %2037 = vmatpush1.bf16.msra.mxu0 0
      %2038 = vmatprep.subr.bf16.mxu0 0
      %2039 = vmatpush1.bf16.msra.mxu0 0
      %2040 = vmatprep.subr.bf16.mxu0 0
      %2041 = vmatpush1.bf16.msra.mxu0 0
      %2042 = vmatprep.subr.bf16.mxu0 0
      %2043 = vmatpush1.bf16.msra.mxu0 0
      %2044 = vmatprep.subr.bf16.mxu0 0
      %2045 = vmatpush1.bf16.msra.mxu0 0
      %2046 = vmatprep.mubr.bf16.mxu0 0
      %2047 = vmatmul.mubr.bf16.gmra.mrb[0].mxu0 %v1964
      %v2048 = vpop.f32.mrb[0].mxu0
      %v2049 = vadd.f32 0.0, %v2048
      %v2050 = vpop.f32.mrb[0].mxu0
      %v2051 = vpop.f32.mrb[0].mxu0
      %v2052 = vadd.f32 0.0, %v2051
      %v2053 = vpop.f32.mrb[0].mxu0
      %2054 = vdwg.mxu0
      %v2072 = vunpack.c.l.b16 %v1912
      %v2073 = vunpack.c.l.b16 %v1913
      %v2074 = vunpack.c.l.b16 %v1914
      %v2075 = vunpack.c.l.b16 %v1915
      %v2076 = vunpack.c.l.b16 %v1916
      %v2077 = vunpack.c.l.b16 %v1917
      %v2078 = vunpack.c.l.b16 %v1918
      %v2079 = vunpack.c.l.b16 %v1919
      %v2080 = vunpack.c.l.b16 %v1920
      %v2081 = vunpack.c.l.b16 %v1921
      %v2082 = vunpack.c.l.b16 %v1922
      %v2083 = vunpack.c.l.b16 %v1923
      %v2084 = vunpack.c.l.b16 %v1924
      %v2085 = vunpack.c.l.b16 %v1925
      %v2086 = vunpack.c.l.b16 %v1926
      %v2087 = vunpack.c.l.b16 %v1927
      %v2088 = vpack.c.b16 %v2073, %v2072
      %v2089 = vpack.c.b16 %v2075, %v2074
      %v2090 = vpack.c.b16 %v2077, %v2076
      %v2091 = vpack.c.b16 %v2079, %v2078
      %v2092 = vpack.c.b16 %v2081, %v2080
      %v2093 = vpack.c.b16 %v2083, %v2082
      %v2094 = vpack.c.b16 %v2085, %v2084
      %v2095 = vpack.c.b16 %v2087, %v2086
      %2104 = vmatprep.subr.bf16.mxu0 0
      %2105 = vmatpush1.bf16.msra.mxu0 %v2088
      %2106 = vmatprep.subr.bf16.mxu0 0
      %2107 = vmatpush1.bf16.msra.mxu0 %v2089
      %2108 = vmatprep.subr.bf16.mxu0 0
      %2109 = vmatpush1.bf16.msra.mxu0 %v2090
      %2110 = vmatprep.subr.bf16.mxu0 0
      %2111 = vmatpush1.bf16.msra.mxu0 %v2091
      %2112 = vmatprep.subr.bf16.mxu0 0
      %2113 = vmatpush1.bf16.msra.mxu0 %v2092
      %2114 = vmatprep.subr.bf16.mxu0 0
      %2115 = vmatpush1.bf16.msra.mxu0 %v2093
      %2116 = vmatprep.subr.bf16.mxu0 0
      %2117 = vmatpush1.bf16.msra.mxu0 %v2094
      %2118 = vmatprep.subr.bf16.mxu0 0
      %2119 = vmatpush1.bf16.msra.mxu0 %v2095
      %2120 = vmatprep.subr.bf16.mxu0 0
      %2121 = vmatpush1.bf16.msra.mxu0 0
      %2122 = vmatprep.subr.bf16.mxu0 0
      %2123 = vmatpush1.bf16.msra.mxu0 0
      %2124 = vmatprep.subr.bf16.mxu0 0
      %2125 = vmatpush1.bf16.msra.mxu0 0
      %2126 = vmatprep.subr.bf16.mxu0 0
      %2127 = vmatpush1.bf16.msra.mxu0 0
      %2128 = vmatprep.subr.bf16.mxu0 0
      %2129 = vmatpush1.bf16.msra.mxu0 0
      %2130 = vmatprep.subr.bf16.mxu0 0
      %2131 = vmatpush1.bf16.msra.mxu0 0
      %2132 = vmatprep.subr.bf16.mxu0 0
      %2133 = vmatpush1.bf16.msra.mxu0 0
      %2134 = vmatprep.subr.bf16.mxu0 0
      %2135 = vmatpush1.bf16.msra.mxu0 0
      %2136 = vmatprep.mubr.bf16.mxu0 0
      %2137 = vmatmul.mubr.bf16.gmra.mrb[0].mxu0 %v1951
      %v2138 = vpop.f32.mrb[0].mxu0
      %v2139 = vadd.f32 %v2049, %v2138
      %v2140 = vpop.f32.mrb[0].mxu0
      %v2141 = vpop.f32.mrb[0].mxu0
      %v2142 = vadd.f32 %v2052, %v2141
      %v2143 = vpop.f32.mrb[0].mxu0
      %2144 = vdwg.mxu0
      %v2145 = vld [vmem:[#allocation2] sm:$0xe]
      %v2146 = vld [vmem:[%s18] sm:$0xf]
      %v2147 = vld [vmem:[%s18 + $0x4] sm:$0xf]
      %v2148 = vld [vmem:[%s18 + $0x8] sm:$0xf]
      %v2149 = vld [vmem:[%s18 + $0xc] sm:$0xf]
      %v2150 = vld [vmem:[%s18 + $0x10] sm:$0xf]
      %v2151 = vld [vmem:[%s18 + $0x14] sm:$0xf]
      %v2152 = vld [vmem:[%s18 + $0x18] sm:$0xf]
      %v2153 = vld [vmem:[%s18 + $0x1c] sm:$0xf]
      %v2154 = vld [vmem:[%s18 + $0x20] sm:$0xf]
      %v2155 = vld [vmem:[%s18 + $0x24] sm:$0xf]
      %v2156 = vld [vmem:[%s18 + $0x28] sm:$0xf]
      %v2157 = vld [vmem:[%s18 + $0x2c] sm:$0xf]
      %v2158 = vld [vmem:[%s18 + $0x30] sm:$0xf]
      %v2159 = vld [vmem:[%s18 + $0x34] sm:$0xf]
      %v2160 = vld [vmem:[%s18 + $0x38] sm:$0xf]
      %v2161 = vld [vmem:[%s18 + $0x3c] sm:$0xf]
      %v2163 = vunpack.c.l.b16 %v2145
      %v2164 = vpack.c.b16 %v1949, %v2163
      %v2165 = vrot.slane %v2164, 1
      %v2166 = vrot.slane %v1952, 1
      %v2167 = vsel %vm958, %v2165, %v2166
      %v2185 = vunpack.c.l.b16 %v2146
      %v2186 = vunpack.c.l.b16 %v2147
      %v2187 = vunpack.c.l.b16 %v2148
      %v2188 = vunpack.c.l.b16 %v2149
      %v2189 = vunpack.c.l.b16 %v2150
      %v2190 = vunpack.c.l.b16 %v2151
      %v2191 = vunpack.c.l.b16 %v2152
      %v2192 = vunpack.c.l.b16 %v2153
      %v2193 = vunpack.c.l.b16 %v2154
      %v2194 = vunpack.c.l.b16 %v2155
      %v2195 = vunpack.c.l.b16 %v2156
      %v2196 = vunpack.c.l.b16 %v2157
      %v2197 = vunpack.c.l.b16 %v2158
      %v2198 = vunpack.c.l.b16 %v2159
      %v2199 = vunpack.c.l.b16 %v2160
      %v2200 = vunpack.c.l.b16 %v2161
      %v2201 = vpack.c.b16 %v2186, %v2185
      %v2202 = vpack.c.b16 %v2188, %v2187
      %v2203 = vpack.c.b16 %v2190, %v2189
      %v2204 = vpack.c.b16 %v2192, %v2191
      %v2205 = vpack.c.b16 %v2194, %v2193
      %v2206 = vpack.c.b16 %v2196, %v2195
      %v2207 = vpack.c.b16 %v2198, %v2197
      %v2208 = vpack.c.b16 %v2200, %v2199
      %2217 = vmatprep.subr.bf16.mxu0 0
      %2218 = vmatpush1.bf16.msra.mxu0 %v2201
      %2219 = vmatprep.subr.bf16.mxu0 0
      %2220 = vmatpush1.bf16.msra.mxu0 %v2202
      %2221 = vmatprep.subr.bf16.mxu0 0
      %2222 = vmatpush1.bf16.msra.mxu0 %v2203
      %2223 = vmatprep.subr.bf16.mxu0 0
      %2224 = vmatpush1.bf16.msra.mxu0 %v2204
      %2225 = vmatprep.subr.bf16.mxu0 0
      %2226 = vmatpush1.bf16.msra.mxu0 %v2205
      %2227 = vmatprep.subr.bf16.mxu0 0
      %2228 = vmatpush1.bf16.msra.mxu0 %v2206
      %2229 = vmatprep.subr.bf16.mxu0 0
      %2230 = vmatpush1.bf16.msra.mxu0 %v2207
      %2231 = vmatprep.subr.bf16.mxu0 0
      %2232 = vmatpush1.bf16.msra.mxu0 %v2208
      %2233 = vmatprep.subr.bf16.mxu0 0
      %2234 = vmatpush1.bf16.msra.mxu0 0
      %2235 = vmatprep.subr.bf16.mxu0 0
      %2236 = vmatpush1.bf16.msra.mxu0 0
      %2237 = vmatprep.subr.bf16.mxu0 0
      %2238 = vmatpush1.bf16.msra.mxu0 0
      %2239 = vmatprep.subr.bf16.mxu0 0
      %2240 = vmatpush1.bf16.msra.mxu0 0
      %2241 = vmatprep.subr.bf16.mxu0 0
      %2242 = vmatpush1.bf16.msra.mxu0 0
      %2243 = vmatprep.subr.bf16.mxu0 0
      %2244 = vmatpush1.bf16.msra.mxu0 0
      %2245 = vmatprep.subr.bf16.mxu0 0
      %2246 = vmatpush1.bf16.msra.mxu0 0
      %2247 = vmatprep.subr.bf16.mxu0 0
      %2248 = vmatpush1.bf16.msra.mxu0 0
      %2249 = vmatprep.mubr.bf16.mxu0 0
      %2250 = vmatmul.mubr.bf16.gmra.mrb[0].mxu0 %v2167
      %v2251 = vpop.f32.mrb[0].mxu0
      %v2252 = vadd.f32 0.0, %v2251
      %v2253 = vpop.f32.mrb[0].mxu0
      %v2254 = vpop.f32.mrb[0].mxu0
      %v2255 = vadd.f32 0.0, %v2254
      %v2256 = vpop.f32.mrb[0].mxu0
      %2257 = vdwg.mxu0
      %v2258 = vadd.f32 %v2139, %v2252
      %v2259 = vadd.f32 %v2142, %v2255
      %v2260 = vld [vmem:[%s19] sm:$0x1]
      %v2262 = vlaneseq
      %v2263 = vshrl.u32 %v2262, 7
      %v2264 = vsub.s32 0, %v2263
      %v2265 = vrot.slane %v2260, %v2264
      %v2267 = vmul.f32 %v2258, %v2265
      %v2268 = vmul.f32 %v2259, %v2265
      %v2269 = vld [vmem:[%s20] sm:$0x1]
      %v2271 = vlaneseq
      %v2272 = vshrl.u32 %v2271, 7
      %v2273 = vsub.s32 0, %v2272
      %v2274 = vrot.slane %v2269, %v2273
      %v2276 = vadd.f32 %v2267, %v2274
      %v2277 = vadd.f32 %v2268, %v2274
      %v2278 = vmax.f32 %v2276, 0.0
      %v2279 = vmax.f32 %v2277, 0.0
      %2280 = vst [vmem:[%s656] sm:$0xff] %v2278
      %2281 = vst [vmem:[%s656 + $0x8] sm:$0xff] %v2279
      %p2282 = scmp.lt.s32.totalorder %s32, 1
      %s2283 = scalar_select %p2282, %s32, 1
      %s2284 = smul.addr %s2283, 2
      %s2285 = smul.addr %s2284, 8
      %s2286 = scalar_lea.vmem %s21, %s2285
      // Predicated region
      $region105: #{nested_conv_block_forward.1} parent=103 // pred_check
        %p2287 = pneg %p496
      $region106: #{nested_conv_block_forward.1} parent=103 // pred_check_branch
        %2289 = sbr.rel (%p2287) target = $region108
      $region107: #{nested_conv_block_forward.1} parent=103 // pred_region
        _
      $region108: #{nested_conv_block_forward.1} parent=103 // pred_fallthru
        _
    $region104: #{nested_conv_block_forward.1} parent=5 // pred_fallthru
      _
    %p2290 = scmp.le.s32.totalorder 2, %s27
    // Predicated region
    $region109: #{nested_conv_block_forward.1} parent=5 // pred_check
      %p2291 = pneg %p2290
    $region110: #{nested_conv_block_forward.1} parent=5 // pred_check_branch
      %2293 = sbr.rel (%p2291) target = $region112
    $region111: #{nested_conv_block_forward.1} parent=5 // pred_region
      %s2294 = ssub.s32 %s27, 2
      // Predicated region
      $region113: #{nested_conv_block_forward.1} parent=111 // pred_check
        %p2295 = pneg %p502
      $region114: #{nested_conv_block_forward.1} parent=111 // pred_check_branch
        %2297 = sbr.rel (%p2295) target = $region116
      $region115: #{nested_conv_block_forward.1} parent=111 // pred_region
        %p2298 = scmp.lt.s32.totalorder %s33, 1
        %s2299 = scalar_select %p2298, %s33, 1
        %s2300 = smul.addr %s2299, 2
        %s2301 = smul.addr %s2300, 8
        %s2302 = scalar_lea.vmem %s21, %s2301
      $region116: #{nested_conv_block_forward.1} parent=111 // pred_fallthru
        _
    $region112: #{nested_conv_block_forward.1} parent=5 // pred_fallthru
      _
  $region6: #{nested_conv_block_forward.1} parent=0 // loop_footer
    %s31 = sadd.s32 1, %s27
  $region7: #{nested_conv_block_forward.1} parent=0 // loop_footer_branch
    %26 = sbr.rel target = $region3
  $region8: #{nested_conv_block_forward.1} parent=0 // loop_exit
    _

</llo_original>
